<compile_context>
chip_gen: v5e
topology: v5e:2x2
jax: 0.10.0
libtpu: 0.0.40
codegen_flags: <defaults>
</compile_context>

<pallas_src>
import functools

import jax
import jax.numpy as jnp
import numpy as np
from jax.experimental import pallas as pl
from jax.experimental.pallas import tpu as pltpu


def _round_up(x, m):
    return ((x + m - 1) // m) * m


# ----------------------------------------------------------------------------
# Kernel: one (head-group, batch, seq-tile) block per grid step.
#   gate_ref : VMEM (1, 1, G*Dv)    per-lane sigmoid(gate), head-major inside the group
#   q_ref    : VMEM (1, 1, TS, G*D) packed queries for this tile
#   kmem_ref : VMEM (1, G, D, M)    key memories, lane-dense (resident per head-group)
#   vmem_ref : VMEM (1, G, Dv, M)   value memories, lane-dense (resident per head-group)
#   attn_ref : VMEM (1, 1, TS, G*Dv) regular attention output for this tile
#   o_ref    : VMEM (1, 1, TS, G*Dv) gated combination (kernel output)
# ----------------------------------------------------------------------------
def _praxis_memory_kernel(gate_ref, q_ref, kmem_ref, vmem_ref, attn_ref, o_ref,
                          *, k_top, idx_bits):
    G = kmem_ref.shape[1]
    D = kmem_ref.shape[2]
    M = kmem_ref.shape[3]

    q_all = q_ref[0, 0]                                   # (TS, G*D) native dtype
    TS = q_all.shape[0]

    # Packed-key constants, hoisted out of the top-k loop: quantized score in the high
    # bits, bit-inverted column index in the low bits -> globally unique keys, so each
    # selection step is ONE cross-lane max-reduce + ONE masking select.
    nb = 1 << idx_bits                                     # power of two >= M
    col = jax.lax.broadcasted_iota(jnp.int32, (TS, M), 1)
    inv_col = (nb - 1) - col                               # smaller column -> larger key
    scale = jnp.float32(1 << (30 - idx_bits))              # |sim| <= 1.5 -> no i32 overflow
    min_key = jnp.int32(-(2 ** 31 - 1))                    # below every real packed key

    outs = []
    for g in range(G):                                     # static unroll over packed heads
        # F.normalize(q, p=2, dim=-1): rsqrt rides the (otherwise idle) EUP slot.
        qf = q_all[:, g * D:(g + 1) * D].astype(jnp.float32)
        qn = qf * jax.lax.rsqrt(jnp.maximum(jnp.sum(qf * qf, -1, keepdims=True), 1e-24))
        qn = qn.astype(q_all.dtype)

        # Cosine scores on the MXU: native-dtype operands, f32 accumulation, standard
        # A@B orientation against the lane-dense (D, M) key-memory tile.
        kmem = kmem_ref[0, g]                              # (D, M)
        sim = jax.lax.dot_general(qn, kmem, (((1,), (0,)), ((), ())),
                                  preferred_element_type=jnp.float32)   # (TS, M) f32

        # Build the packed key ONCE (clip/scale/cast/mul/add hoisted out of the loop).
        ival = (jnp.clip(sim, -1.5, 1.5) * scale).astype(jnp.int32)
        key0 = ival * nb + inv_col                         # mul, not shift (no UB on negatives)

        def step(_, key_c):
            kmax = jnp.max(key_c, axis=-1, keepdims=True)      # ONE cross-lane reduce
            return jnp.where(key_c == kmax, min_key, key_c)    # unique keys -> single hit

        key_c = jax.lax.fori_loop(0, k_top, step, key0, unroll=True)

        # Sparse top-k weights reconstructed once after the loop (exact f32 scores).
        w = jnp.where(key_c == min_key, sim, 0.0)          # (TS, M)

        # KNN readout: W @ V with V stored lane-dense as (Dv, M) (contract last dims).
        vmem = vmem_ref[0, g]                              # (Dv, M)
        weighted = jax.lax.dot_general(w.astype(vmem.dtype), vmem,
                                       (((1,), (1,)), ((), ())),
                                       preferred_element_type=jnp.float32)  # (TS, Dv)
        outs.append(weighted)

    weighted_all = outs[0] if G == 1 else jnp.concatenate(outs, axis=-1)    # (TS, G*Dv)

    # attn is loaded only now (after the VALU-heavy loop) to keep vregs free during it.
    attn = attn_ref[0, 0].astype(jnp.float32)              # (TS, G*Dv)
    gate = gate_ref[0]                                     # (1, G*Dv) f32
    o_ref[0, 0] = (gate * weighted_all + (1.0 - gate) * attn).astype(o_ref.dtype)


# ----------------------------------------------------------------------------
# Layout plumbing (wrapper-side only).
# ----------------------------------------------------------------------------
def _pack_heads(x, G):
    """(B, H, S, D) -> (B, H//G, S, G*D); lanes are head-major inside the group."""
    B, H, S, D = x.shape
    if G == 1:
        return x
    x = x.reshape(B, H // G, G, S, D)
    x = jnp.transpose(x, (0, 1, 3, 2, 4))
    return x.reshape(B, H // G, S, G * D)


def _unpack_heads(y, G, Dv):
    """(B, H//G, S, G*Dv) -> (B, H, S, Dv)."""
    B, HG, S, _ = y.shape
    if G == 1:
        return y
    y = y.reshape(B, HG, S, G, Dv)
    y = jnp.transpose(y, (0, 1, 3, 2, 4))
    return y.reshape(B, HG * G, S, Dv)


def _choose_head_group(H, D, Dv, M, itemsize, budget):
    """Heads packed per grid step so the attn/output tiles are lane-dense."""
    if Dv >= 128 or H <= 1:
        return 1
    G = max(1, min(H, 128 // Dv))
    while G > 1 and H % G != 0:
        G -= 1
    m_lanes = _round_up(M, 128)
    # Keep the double-buffered resident key/value memories under ~1/3 of the budget.
    while G > 1 and (2 * G * (_round_up(D, 8) + _round_up(Dv, 8)) * m_lanes * itemsize
                     > budget // 3):
        G -= 1
        while G > 1 and H % G != 0:
            G -= 1
    return G


# ----------------------------------------------------------------------------
# Wrapper.
# ----------------------------------------------------------------------------
def praxis_memory_forward(query, key, value, outputs, gate,
                          key_memories, value_memories, k_top=16):
    # TODO(synk): GQA (num_queries > 1, query heads != kv heads) is not modeled here.
    B, H, S, D = query.shape
    Dv = value.shape[-1]
    M = key_memories.shape[1]
    Q = B * S
    k_top = min(k_top, M)
    idx_bits = max(1, (M - 1).bit_length())
    itemsize = jnp.dtype(query.dtype).itemsize
    m_lanes = _round_up(M, 128)

    # Generation-aware budget (v7x: 64 MiB VMEM vs 128 MiB on v5e/v6e).
    try:
        vmem_cap = int(pltpu.get_tpu_info().vmem_capacity_bytes)
    except Exception:  # pragma: no cover - conservative fallback
        vmem_cap = 64 * 1024 * 1024
    budget = vmem_cap * 4 // 5

    G = _choose_head_group(H, D, Dv, M, itemsize, budget)
    HG = H // G

    # VMEM accounting: double-buffered resident memories + double-buffered q/attn/out
    # tiles + ~6 (TS, M) 32-bit in-kernel temporaries (sim, packed key, carry, w, masks).
    fixed = (2 * G * (_round_up(D, 8) + _round_up(Dv, 8)) * m_lanes * itemsize
             + (1 << 20))
    per_row = (6 * 4 * m_lanes
               + 2 * itemsize * (_round_up(G * D, 128) + 2 * _round_up(G * Dv, 128)))
    cap_rows = max(8, ((budget - fixed) // per_row) // 8 * 8) if budget > fixed else 8
    # TODO(synk): for very large max_memories the (TS, M) temporaries force a small TS;
    # a streamed (M-tiled) top-k merge would be needed to keep tiles large.
    TS = min(S, 512, cap_rows)
    if TS < S:                      # partial tail block is padded/dropped by Pallas
        TS = max(8, (TS // 8) * 8)
    ns = pl.cdiv(S, TS)
    vmem_limit = int(min(vmem_cap * 9 // 10, fixed + TS * per_row + (8 << 20)))

    # Layout plumbing: lane-dense memories (last dim = M) and G packed heads per tile.
    q_p = _pack_heads(query, G)
    attn_p = _pack_heads(outputs, G)
    kmem_p = jnp.swapaxes(key_memories, 1, 2).reshape(HG, G, D, M)
    vmem_p = jnp.swapaxes(value_memories, 1, 2).reshape(HG, G, Dv, M)
    gate_lanes = jnp.repeat(jax.nn.sigmoid(gate.astype(jnp.float32)), Dv)
    gate_lanes = gate_lanes.reshape(HG, 1, G * Dv)

    kernel = functools.partial(_praxis_memory_kernel, k_top=k_top, idx_bits=idx_bits)

    out_p = pl.pallas_call(
        kernel,
        out_shape=jax.ShapeDtypeStruct((B, HG, S, G * Dv), query.dtype),
        grid_spec=pltpu.PrefetchScalarGridSpec(
            num_scalar_prefetch=0,
            grid=(HG, B, ns),   # head-group outermost -> memories stay VMEM-resident
            in_specs=[
                pl.BlockSpec((1, 1, G * Dv), lambda h, b, s: (h, 0, 0)),         # gate
                pl.BlockSpec((1, 1, TS, G * D), lambda h, b, s: (b, h, s, 0)),   # query
                pl.BlockSpec((1, G, D, M), lambda h, b, s: (h, 0, 0, 0)),        # key mem
                pl.BlockSpec((1, G, Dv, M), lambda h, b, s: (h, 0, 0, 0)),       # value mem
                pl.BlockSpec((1, 1, TS, G * Dv), lambda h, b, s: (b, h, s, 0)),  # attn out
            ],
            out_specs=pl.BlockSpec((1, 1, TS, G * Dv), lambda h, b, s: (b, h, s, 0)),
        ),
        compiler_params=pltpu.CompilerParams(
            dimension_semantics=("parallel", "parallel", "parallel"),
            vmem_limit_bytes=vmem_limit),
    )(gate_lanes, q_p, kmem_p, vmem_p, attn_p)

    combined = _unpack_heads(out_p, G, Dv)

    # ---- FIFO memory update (_update_memory): stateless JAX glue ------------
    # Equivalent to roll(shift=space) followed by overwriting the first `space` rows.
    # TODO(synk): a circular write pointer would avoid rewriting the full buffers in HBM,
    # but changes the buffer layout vs the PyTorch roll-based semantics, so it is kept.
    space = min(Q, M)
    k_rows = jnp.transpose(key, (1, 0, 2, 3)).reshape(H, Q, D)[:, :space]
    v_rows = jnp.transpose(value, (1, 0, 2, 3)).reshape(H, Q, Dv)[:, :space]
    k_rows = k_rows.astype(jnp.float32)
    k_rows = k_rows * jax.lax.rsqrt(
        jnp.maximum(jnp.sum(k_rows * k_rows, -1, keepdims=True), 1e-24))
    new_kmem = jnp.concatenate(
        [k_rows.astype(key_memories.dtype), key_memories[:, :M - space]], axis=1)
    new_vmem = jnp.concatenate(
        [v_rows.astype(value_memories.dtype), value_memories[:, :M - space]], axis=1)

    return combined, new_kmem, new_vmem


# ----------------------------------------------------------------------------
# Pure-JAX reference (mirrors the PyTorch forward run at the input dtype).
# ----------------------------------------------------------------------------
def praxis_memory_reference(query, key, value, outputs, gate,
                            key_memories, value_memories, k_top=16):
    B, H, S, D = query.shape
    Dv = value.shape[-1]
    Q = B * S
    M = key_memories.shape[1]
    k_top = min(k_top, M)

    q = jnp.transpose(query, (1, 0, 2, 3)).reshape(H, Q, D).astype(jnp.float32)
    qn = q * jax.lax.rsqrt(jnp.maximum(jnp.sum(q * q, -1, keepdims=True), 1e-24))
    qn = qn.astype(query.dtype).astype(jnp.float32)          # MXU operand dtype
    sim = jnp.einsum('hqd,hmd->hqm', qn, key_memories.astype(jnp.float32),
                     precision=jax.lax.Precision.HIGHEST)
    scores, idx = jax.lax.top_k(sim, k_top)                  # (H, Q, k)
    scores = scores.astype(query.dtype).astype(jnp.float32)  # MXU operand dtype
    vals = jax.vmap(lambda vm, ix: vm[ix])(
        value_memories.astype(jnp.float32), idx)             # (H, Q, k, Dv)
    weighted = jnp.sum(vals * scores[..., None], axis=2)     # (H, Q, Dv)
    weighted = jnp.transpose(weighted.reshape(H, B, S, Dv), (1, 0, 2, 3))
    g = jax.nn.sigmoid(gate.astype(jnp.float32)).reshape(1, H, 1, 1)
    return g * weighted + (1.0 - g) * outputs.astype(jnp.float32)


if __name__ == "__main__":
    # Small config consistent with the module: hidden_size=32, num_heads=2 ->
    # head_dim=16, num_queries=1, differential=False, k=16, max_memories=128
    # (scaled down). Compute dtype bf16 (production dtype for the MXU path).
    B, H, S, D = 2, 2, 8, 16
    Dv = D
    MAX_MEM = 128
    K_TOP = 16
    dtype = jnp.bfloat16

    root = jax.random.PRNGKey(0)
    kq, kk_, kv, ko, kg, kkm, kvm = jax.random.split(root, 7)

    query = jax.random.normal(kq, (B, H, S, D), jnp.float32).astype(dtype)
    key = jax.random.normal(kk_, (B, H, S, D), jnp.float32).astype(dtype)
    value = jax.random.normal(kv, (B, H, S, Dv), jnp.float32).astype(dtype)
    outputs = jax.random.normal(ko, (B, H, S, Dv), jnp.float32).astype(dtype)

    gate = 0.01 * jax.random.normal(kg, (H,), jnp.float32)
    key_memories = jax.random.normal(kkm, (H, MAX_MEM, D), jnp.float32)
    key_memories = (key_memories * jax.lax.rsqrt(
        jnp.maximum(jnp.sum(key_memories ** 2, -1, keepdims=True), 1e-24))
    ).astype(dtype)
    value_memories = jax.random.normal(
        kvm, (H, MAX_MEM, Dv), jnp.float32).astype(dtype)

    combined, new_kmem, new_vmem = praxis_memory_forward(
        query, key, value, outputs, gate, key_memories, value_memories, K_TOP)
    combined = jax.block_until_ready(combined)

    ref = praxis_memory_reference(
        query, key, value, outputs, gate, key_memories, value_memories, K_TOP)
    np.testing.assert_allclose(np.asarray(combined.astype(jnp.float32)),
                               np.asarray(ref), rtol=2e-2, atol=2e-2)

    # Validate the FIFO memory update against the roll-based PyTorch spec.
    space = min(B * S, MAX_MEM)
    k_flat = jnp.transpose(key, (1, 0, 2, 3)).reshape(H, B * S, D).astype(jnp.float32)
    k_norm = (k_flat * jax.lax.rsqrt(
        jnp.maximum(jnp.sum(k_flat * k_flat, -1, keepdims=True), 1e-24))).astype(dtype)
    v_flat = jnp.transpose(value, (1, 0, 2, 3)).reshape(H, B * S, Dv)
    ref_kmem = jnp.roll(key_memories, shift=space, axis=1
                        ).at[:, :space].set(k_norm[:, :space])
    ref_vmem = jnp.roll(value_memories, shift=space, axis=1
                        ).at[:, :space].set(v_flat[:, :space])
    np.testing.assert_allclose(np.asarray(new_kmem.astype(jnp.float32)),
                               np.asarray(ref_kmem.astype(jnp.float32)),
                               rtol=1e-2, atol=1e-2)
    np.testing.assert_allclose(np.asarray(new_vmem.astype(jnp.float32)),
                               np.asarray(ref_vmem.astype(jnp.float32)),
                               rtol=0, atol=0)

    # TODO(synk): subsampled-KNN path (sample_size < 1.0) is not modeled (full-memory KNN only).
    # TODO(synk): memory_churn / update_counts buffers are never modified in the reference
    # forward(), so they are not modeled here.
    print("KERNEL_OK")
</pallas_src>

<mosaic_0001>
module attributes {stable_mosaic.version = 11 : i64} {
  func.func @_praxis_memory_kernel(%arg0: i32, %arg1: i32, %arg2: i32, %arg3: memref<1x1x32xf32, #tpu.memory_space<vmem>>, %arg4: memref<1x1x8x32xbf16, #tpu.memory_space<vmem>>, %arg5: memref<1x2x16x128xbf16, #tpu.memory_space<vmem>>, %arg6: memref<1x2x16x128xbf16, #tpu.memory_space<vmem>>, %arg7: memref<1x1x8x32xbf16, #tpu.memory_space<vmem>>, %arg8: memref<1x1x8x32xbf16, #tpu.memory_space<vmem>>) attributes {dimension_semantics = [#tpu.dimension_semantics<parallel>, #tpu.dimension_semantics<parallel>, #tpu.dimension_semantics<parallel>], iteration_bounds = array<i64: 1, 2, 1>, scalar_prefetch = 0 : i64, scratch_operands = 0 : i64, tpu.core_type = #tpu.core_type<tc>, window_params = [{transform_indices = @transform_0, window_bounds = array<i64: 1, 1, 32>}, {transform_indices = @transform_1, window_bounds = array<i64: 1, 1, 8, 32>}, {transform_indices = @transform_2, window_bounds = array<i64: 1, 2, 16, 128>}, {transform_indices = @transform_3, window_bounds = array<i64: 1, 2, 16, 128>}, {transform_indices = @transform_4, window_bounds = array<i64: 1, 1, 8, 32>}, {transform_indices = @transform_5, window_bounds = array<i64: 1, 1, 8, 32>}]} {
    %c0 = arith.constant 0 : index
    %c0_0 = arith.constant 0 : index
    %c0_1 = arith.constant 0 : index
    %c0_2 = arith.constant 0 : index
    %0 = vector.load %arg4[%c0, %c0_0, %c0_1, %c0_2] : memref<1x1x8x32xbf16, #tpu.memory_space<vmem>>, vector<1x1x8x32xbf16>
    %1 = vector.shape_cast %0 : vector<1x1x8x32xbf16> to vector<8x32xbf16>
    %2 = tpu.iota {dimensions = array<i32: 1>} : vector<8x128xi32>
    %c127_i32 = arith.constant 127 : i32
    %3 = vector.broadcast %c127_i32 : i32 to vector<8x128xi32>
    %4 = arith.subi %3, %2 : vector<8x128xi32>
    %5 = vector.extract_strided_slice %1 {offsets = [0, 0], sizes = [8, 16], strides = [1, 1]} : vector<8x32xbf16> to vector<8x16xbf16>
    %6 = arith.extf %5 : vector<8x16xbf16> to vector<8x16xf32>
    %7 = arith.mulf %6, %6 : vector<8x16xf32>
    %cst = arith.constant dense<0.000000e+00> : vector<8xf32>
    %8 = vector.multi_reduction <add>, %7, %cst [1] : vector<8x16xf32> to vector<8xf32>
    %9 = vector.shape_cast %8 : vector<8xf32> to vector<8x1xf32>
    %cst_3 = arith.constant 1.000000e-24 : f32
    %10 = vector.broadcast %cst_3 : f32 to vector<8x1xf32>
    %11 = arith.maximumf %9, %10 : vector<8x1xf32>
    %12 = math.rsqrt %11 : vector<8x1xf32>
    %13 = vector.broadcast %12 : vector<8x1xf32> to vector<8x16xf32>
    %14 = arith.mulf %6, %13 : vector<8x16xf32>
    %15 = arith.truncf %14 : vector<8x16xf32> to vector<8x16xbf16>
    %c0_4 = arith.constant 0 : index
    %c0_5 = arith.constant 0 : index
    %c0_6 = arith.constant 0 : index
    %c0_7 = arith.constant 0 : index
    %16 = vector.load %arg5[%c0_4, %c0_5, %c0_6, %c0_7] : memref<1x2x16x128xbf16, #tpu.memory_space<vmem>>, vector<1x1x16x128xbf16>
    %17 = vector.shape_cast %16 : vector<1x1x16x128xbf16> to vector<16x128xbf16>
    %cst_8 = arith.constant dense<0.000000e+00> : vector<8x128xf32>
    %18 = tpu.matmul %15, %17, %cst_8 {dimension_numbers = #tpu.dot_dimension_numbers<[1], [0], [0], [1], [0, 0, 1, 1], [], []>} : vector<8x16xbf16>, vector<16x128xbf16>, vector<8x128xf32> -> vector<8x128xf32>
    %cst_9 = arith.constant -1.500000e+00 : f32
    %cst_10 = arith.constant 1.500000e+00 : f32
    %19 = vector.broadcast %cst_9 : f32 to vector<8x128xf32>
    %20 = arith.maximumf %19, %18 : vector<8x128xf32>
    %21 = vector.broadcast %cst_10 : f32 to vector<8x128xf32>
    %22 = arith.minimumf %21, %20 : vector<8x128xf32>
    %cst_11 = arith.constant 0x4B000000 : f32
    %23 = vector.broadcast %cst_11 : f32 to vector<8x128xf32>
    %24 = arith.mulf %22, %23 : vector<8x128xf32>
    %25 = arith.fptosi %24 : vector<8x128xf32> to vector<8x128xi32>
    %c128_i32 = arith.constant 128 : i32
    %26 = vector.broadcast %c128_i32 : i32 to vector<8x128xi32>
    %27 = arith.muli %25, %26 : vector<8x128xi32>
    %28 = arith.addi %27, %4 : vector<8x128xi32>
    %c-2147483647_i32 = arith.constant -2147483647 : i32
    %c0_i32 = arith.constant 0 : i32
    %cst_12 = arith.constant dense<-2147483648> : vector<8xi32>
    %29 = vector.multi_reduction <maxsi>, %28, %cst_12 [1] : vector<8x128xi32> to vector<8xi32>
    %30 = vector.shape_cast %29 : vector<8xi32> to vector<8x1xi32>
    %31 = vector.broadcast %30 : vector<8x1xi32> to vector<8x128xi32>
    %32 = arith.cmpi eq, %28, %31 : vector<8x128xi32>
    %33 = vector.broadcast %c-2147483647_i32 : i32 to vector<8x128xi32>
    %34 = arith.select %32, %33, %28 : vector<8x128xi1>, vector<8x128xi32>
    %c1_i32 = arith.constant 1 : i32
    %cst_13 = arith.constant dense<-2147483648> : vector<8xi32>
    %35 = vector.multi_reduction <maxsi>, %34, %cst_13 [1] : vector<8x128xi32> to vector<8xi32>
    %36 = vector.shape_cast %35 : vector<8xi32> to vector<8x1xi32>
    %37 = vector.broadcast %36 : vector<8x1xi32> to vector<8x128xi32>
    %38 = arith.cmpi eq, %34, %37 : vector<8x128xi32>
    %39 = vector.broadcast %c-2147483647_i32 : i32 to vector<8x128xi32>
    %40 = arith.select %38, %39, %34 : vector<8x128xi1>, vector<8x128xi32>
    %c2_i32 = arith.constant 2 : i32
    %cst_14 = arith.constant dense<-2147483648> : vector<8xi32>
    %41 = vector.multi_reduction <maxsi>, %40, %cst_14 [1] : vector<8x128xi32> to vector<8xi32>
    %42 = vector.shape_cast %41 : vector<8xi32> to vector<8x1xi32>
    %43 = vector.broadcast %42 : vector<8x1xi32> to vector<8x128xi32>
    %44 = arith.cmpi eq, %40, %43 : vector<8x128xi32>
    %45 = vector.broadcast %c-2147483647_i32 : i32 to vector<8x128xi32>
    %46 = arith.select %44, %45, %40 : vector<8x128xi1>, vector<8x128xi32>
    %c3_i32 = arith.constant 3 : i32
    %cst_15 = arith.constant dense<-2147483648> : vector<8xi32>
    %47 = vector.multi_reduction <maxsi>, %46, %cst_15 [1] : vector<8x128xi32> to vector<8xi32>
    %48 = vector.shape_cast %47 : vector<8xi32> to vector<8x1xi32>
    %49 = vector.broadcast %48 : vector<8x1xi32> to vector<8x128xi32>
    %50 = arith.cmpi eq, %46, %49 : vector<8x128xi32>
    %51 = vector.broadcast %c-2147483647_i32 : i32 to vector<8x128xi32>
    %52 = arith.select %50, %51, %46 : vector<8x128xi1>, vector<8x128xi32>
    %c4_i32 = arith.constant 4 : i32
    %cst_16 = arith.constant dense<-2147483648> : vector<8xi32>
    %53 = vector.multi_reduction <maxsi>, %52, %cst_16 [1] : vector<8x128xi32> to vector<8xi32>
    %54 = vector.shape_cast %53 : vector<8xi32> to vector<8x1xi32>
    %55 = vector.broadcast %54 : vector<8x1xi32> to vector<8x128xi32>
    %56 = arith.cmpi eq, %52, %55 : vector<8x128xi32>
    %57 = vector.broadcast %c-2147483647_i32 : i32 to vector<8x128xi32>
    %58 = arith.select %56, %57, %52 : vector<8x128xi1>, vector<8x128xi32>
    %c5_i32 = arith.constant 5 : i32
    %cst_17 = arith.constant dense<-2147483648> : vector<8xi32>
    %59 = vector.multi_reduction <maxsi>, %58, %cst_17 [1] : vector<8x128xi32> to vector<8xi32>
    %60 = vector.shape_cast %59 : vector<8xi32> to vector<8x1xi32>
    %61 = vector.broadcast %60 : vector<8x1xi32> to vector<8x128xi32>
    %62 = arith.cmpi eq, %58, %61 : vector<8x128xi32>
    %63 = vector.broadcast %c-2147483647_i32 : i32 to vector<8x128xi32>
    %64 = arith.select %62, %63, %58 : vector<8x128xi1>, vector<8x128xi32>
    %c6_i32 = arith.constant 6 : i32
    %cst_18 = arith.constant dense<-2147483648> : vector<8xi32>
    %65 = vector.multi_reduction <maxsi>, %64, %cst_18 [1] : vector<8x128xi32> to vector<8xi32>
    %66 = vector.shape_cast %65 : vector<8xi32> to vector<8x1xi32>
    %67 = vector.broadcast %66 : vector<8x1xi32> to vector<8x128xi32>
    %68 = arith.cmpi eq, %64, %67 : vector<8x128xi32>
    %69 = vector.broadcast %c-2147483647_i32 : i32 to vector<8x128xi32>
    %70 = arith.select %68, %69, %64 : vector<8x128xi1>, vector<8x128xi32>
    %c7_i32 = arith.constant 7 : i32
    %cst_19 = arith.constant dense<-2147483648> : vector<8xi32>
    %71 = vector.multi_reduction <maxsi>, %70, %cst_19 [1] : vector<8x128xi32> to vector<8xi32>
    %72 = vector.shape_cast %71 : vector<8xi32> to vector<8x1xi32>
    %73 = vector.broadcast %72 : vector<8x1xi32> to vector<8x128xi32>
    %74 = arith.cmpi eq, %70, %73 : vector<8x128xi32>
    %75 = vector.broadcast %c-2147483647_i32 : i32 to vector<8x128xi32>
    %76 = arith.select %74, %75, %70 : vector<8x128xi1>, vector<8x128xi32>
    %c8_i32 = arith.constant 8 : i32
    %cst_20 = arith.constant dense<-2147483648> : vector<8xi32>
    %77 = vector.multi_reduction <maxsi>, %76, %cst_20 [1] : vector<8x128xi32> to vector<8xi32>
    %78 = vector.shape_cast %77 : vector<8xi32> to vector<8x1xi32>
    %79 = vector.broadcast %78 : vector<8x1xi32> to vector<8x128xi32>
    %80 = arith.cmpi eq, %76, %79 : vector<8x128xi32>
    %81 = vector.broadcast %c-2147483647_i32 : i32 to vector<8x128xi32>
    %82 = arith.select %80, %81, %76 : vector<8x128xi1>, vector<8x128xi32>
    %c9_i32 = arith.constant 9 : i32
    %cst_21 = arith.constant dense<-2147483648> : vector<8xi32>
    %83 = vector.multi_reduction <maxsi>, %82, %cst_21 [1] : vector<8x128xi32> to vector<8xi32>
    %84 = vector.shape_cast %83 : vector<8xi32> to vector<8x1xi32>
    %85 = vector.broadcast %84 : vector<8x1xi32> to vector<8x128xi32>
    %86 = arith.cmpi eq, %82, %85 : vector<8x128xi32>
    %87 = vector.broadcast %c-2147483647_i32 : i32 to vector<8x128xi32>
    %88 = arith.select %86, %87, %82 : vector<8x128xi1>, vector<8x128xi32>
    %c10_i32 = arith.constant 10 : i32
    %cst_22 = arith.constant dense<-2147483648> : vector<8xi32>
    %89 = vector.multi_reduction <maxsi>, %88, %cst_22 [1] : vector<8x128xi32> to vector<8xi32>
    %90 = vector.shape_cast %89 : vector<8xi32> to vector<8x1xi32>
    %91 = vector.broadcast %90 : vector<8x1xi32> to vector<8x128xi32>
    %92 = arith.cmpi eq, %88, %91 : vector<8x128xi32>
    %93 = vector.broadcast %c-2147483647_i32 : i32 to vector<8x128xi32>
    %94 = arith.select %92, %93, %88 : vector<8x128xi1>, vector<8x128xi32>
    %c11_i32 = arith.constant 11 : i32
    %cst_23 = arith.constant dense<-2147483648> : vector<8xi32>
    %95 = vector.multi_reduction <maxsi>, %94, %cst_23 [1] : vector<8x128xi32> to vector<8xi32>
    %96 = vector.shape_cast %95 : vector<8xi32> to vector<8x1xi32>
    %97 = vector.broadcast %96 : vector<8x1xi32> to vector<8x128xi32>
    %98 = arith.cmpi eq, %94, %97 : vector<8x128xi32>
    %99 = vector.broadcast %c-2147483647_i32 : i32 to vector<8x128xi32>
    %100 = arith.select %98, %99, %94 : vector<8x128xi1>, vector<8x128xi32>
    %c12_i32 = arith.constant 12 : i32
    %cst_24 = arith.constant dense<-2147483648> : vector<8xi32>
    %101 = vector.multi_reduction <maxsi>, %100, %cst_24 [1] : vector<8x128xi32> to vector<8xi32>
    %102 = vector.shape_cast %101 : vector<8xi32> to vector<8x1xi32>
    %103 = vector.broadcast %102 : vector<8x1xi32> to vector<8x128xi32>
    %104 = arith.cmpi eq, %100, %103 : vector<8x128xi32>
    %105 = vector.broadcast %c-2147483647_i32 : i32 to vector<8x128xi32>
    %106 = arith.select %104, %105, %100 : vector<8x128xi1>, vector<8x128xi32>
    %c13_i32 = arith.constant 13 : i32
    %cst_25 = arith.constant dense<-2147483648> : vector<8xi32>
    %107 = vector.multi_reduction <maxsi>, %106, %cst_25 [1] : vector<8x128xi32> to vector<8xi32>
    %108 = vector.shape_cast %107 : vector<8xi32> to vector<8x1xi32>
    %109 = vector.broadcast %108 : vector<8x1xi32> to vector<8x128xi32>
    %110 = arith.cmpi eq, %106, %109 : vector<8x128xi32>
    %111 = vector.broadcast %c-2147483647_i32 : i32 to vector<8x128xi32>
    %112 = arith.select %110, %111, %106 : vector<8x128xi1>, vector<8x128xi32>
    %c14_i32 = arith.constant 14 : i32
    %cst_26 = arith.constant dense<-2147483648> : vector<8xi32>
    %113 = vector.multi_reduction <maxsi>, %112, %cst_26 [1] : vector<8x128xi32> to vector<8xi32>
    %114 = vector.shape_cast %113 : vector<8xi32> to vector<8x1xi32>
    %115 = vector.broadcast %114 : vector<8x1xi32> to vector<8x128xi32>
    %116 = arith.cmpi eq, %112, %115 : vector<8x128xi32>
    %117 = vector.broadcast %c-2147483647_i32 : i32 to vector<8x128xi32>
    %118 = arith.select %116, %117, %112 : vector<8x128xi1>, vector<8x128xi32>
    %c15_i32 = arith.constant 15 : i32
    %cst_27 = arith.constant dense<-2147483648> : vector<8xi32>
    %119 = vector.multi_reduction <maxsi>, %118, %cst_27 [1] : vector<8x128xi32> to vector<8xi32>
    %120 = vector.shape_cast %119 : vector<8xi32> to vector<8x1xi32>
    %121 = vector.broadcast %120 : vector<8x1xi32> to vector<8x128xi32>
    %122 = arith.cmpi eq, %118, %121 : vector<8x128xi32>
    %123 = vector.broadcast %c-2147483647_i32 : i32 to vector<8x128xi32>
    %124 = arith.select %122, %123, %118 : vector<8x128xi1>, vector<8x128xi32>
    %c-2147483647_i32_28 = arith.constant -2147483647 : i32
    %125 = vector.broadcast %c-2147483647_i32_28 : i32 to vector<8x128xi32>
    %126 = arith.cmpi eq, %124, %125 : vector<8x128xi32>
    %cst_29 = arith.constant 0.000000e+00 : f32
    %127 = vector.broadcast %cst_29 : f32 to vector<8x128xf32>
    %128 = arith.select %126, %18, %127 : vector<8x128xi1>, vector<8x128xf32>
    %c0_30 = arith.constant 0 : index
    %c0_31 = arith.constant 0 : index
    %c0_32 = arith.constant 0 : index
    %c0_33 = arith.constant 0 : index
    %129 = vector.load %arg6[%c0_30, %c0_31, %c0_32, %c0_33] : memref<1x2x16x128xbf16, #tpu.memory_space<vmem>>, vector<1x1x16x128xbf16>
    %130 = vector.shape_cast %129 : vector<1x1x16x128xbf16> to vector<16x128xbf16>
    %131 = arith.truncf %128 : vector<8x128xf32> to vector<8x128xbf16>
    %cst_34 = arith.constant dense<0.000000e+00> : vector<8x16xf32>
    %132 = tpu.matmul %131, %130, %cst_34 {dimension_numbers = #tpu.dot_dimension_numbers<[1], [1], [0], [0], [0, 0, 1, 0], [], []>} : vector<8x128xbf16>, vector<16x128xbf16>, vector<8x16xf32> -> vector<8x16xf32>
    %133 = vector.extract_strided_slice %1 {offsets = [0, 16], sizes = [8, 16], strides = [1, 1]} : vector<8x32xbf16> to vector<8x16xbf16>
    %134 = arith.extf %133 : vector<8x16xbf16> to vector<8x16xf32>
    %135 = arith.mulf %134, %134 : vector<8x16xf32>
    %cst_35 = arith.constant dense<0.000000e+00> : vector<8xf32>
    %136 = vector.multi_reduction <add>, %135, %cst_35 [1] : vector<8x16xf32> to vector<8xf32>
    %137 = vector.shape_cast %136 : vector<8xf32> to vector<8x1xf32>
    %cst_36 = arith.constant 1.000000e-24 : f32
    %138 = vector.broadcast %cst_36 : f32 to vector<8x1xf32>
    %139 = arith.maximumf %137, %138 : vector<8x1xf32>
    %140 = math.rsqrt %139 : vector<8x1xf32>
    %141 = vector.broadcast %140 : vector<8x1xf32> to vector<8x16xf32>
    %142 = arith.mulf %134, %141 : vector<8x16xf32>
    %143 = arith.truncf %142 : vector<8x16xf32> to vector<8x16xbf16>
    %c0_37 = arith.constant 0 : index
    %c1 = arith.constant 1 : index
    %c0_38 = arith.constant 0 : index
    %c0_39 = arith.constant 0 : index
    %144 = vector.load %arg5[%c0_37, %c1, %c0_38, %c0_39] : memref<1x2x16x128xbf16, #tpu.memory_space<vmem>>, vector<1x1x16x128xbf16>
    %145 = vector.shape_cast %144 : vector<1x1x16x128xbf16> to vector<16x128xbf16>
    %cst_40 = arith.constant dense<0.000000e+00> : vector<8x128xf32>
    %146 = tpu.matmul %143, %145, %cst_40 {dimension_numbers = #tpu.dot_dimension_numbers<[1], [0], [0], [1], [0, 0, 1, 1], [], []>} : vector<8x16xbf16>, vector<16x128xbf16>, vector<8x128xf32> -> vector<8x128xf32>
    %cst_41 = arith.constant -1.500000e+00 : f32
    %cst_42 = arith.constant 1.500000e+00 : f32
    %147 = vector.broadcast %cst_41 : f32 to vector<8x128xf32>
    %148 = arith.maximumf %147, %146 : vector<8x128xf32>
    %149 = vector.broadcast %cst_42 : f32 to vector<8x128xf32>
    %150 = arith.minimumf %149, %148 : vector<8x128xf32>
    %cst_43 = arith.constant 0x4B000000 : f32
    %151 = vector.broadcast %cst_43 : f32 to vector<8x128xf32>
    %152 = arith.mulf %150, %151 : vector<8x128xf32>
    %153 = arith.fptosi %152 : vector<8x128xf32> to vector<8x128xi32>
    %c128_i32_44 = arith.constant 128 : i32
    %154 = vector.broadcast %c128_i32_44 : i32 to vector<8x128xi32>
    %155 = arith.muli %153, %154 : vector<8x128xi32>
    %156 = arith.addi %155, %4 : vector<8x128xi32>
    %c-2147483647_i32_45 = arith.constant -2147483647 : i32
    %c0_i32_46 = arith.constant 0 : i32
    %cst_47 = arith.constant dense<-2147483648> : vector<8xi32>
    %157 = vector.multi_reduction <maxsi>, %156, %cst_47 [1] : vector<8x128xi32> to vector<8xi32>
    %158 = vector.shape_cast %157 : vector<8xi32> to vector<8x1xi32>
    %159 = vector.broadcast %158 : vector<8x1xi32> to vector<8x128xi32>
    %160 = arith.cmpi eq, %156, %159 : vector<8x128xi32>
    %161 = vector.broadcast %c-2147483647_i32_45 : i32 to vector<8x128xi32>
    %162 = arith.select %160, %161, %156 : vector<8x128xi1>, vector<8x128xi32>
    %c1_i32_48 = arith.constant 1 : i32
    %cst_49 = arith.constant dense<-2147483648> : vector<8xi32>
    %163 = vector.multi_reduction <maxsi>, %162, %cst_49 [1] : vector<8x128xi32> to vector<8xi32>
    %164 = vector.shape_cast %163 : vector<8xi32> to vector<8x1xi32>
    %165 = vector.broadcast %164 : vector<8x1xi32> to vector<8x128xi32>
    %166 = arith.cmpi eq, %162, %165 : vector<8x128xi32>
    %167 = vector.broadcast %c-2147483647_i32_45 : i32 to vector<8x128xi32>
    %168 = arith.select %166, %167, %162 : vector<8x128xi1>, vector<8x128xi32>
    %c2_i32_50 = arith.constant 2 : i32
    %cst_51 = arith.constant dense<-2147483648> : vector<8xi32>
    %169 = vector.multi_reduction <maxsi>, %168, %cst_51 [1] : vector<8x128xi32> to vector<8xi32>
    %170 = vector.shape_cast %169 : vector<8xi32> to vector<8x1xi32>
    %171 = vector.broadcast %170 : vector<8x1xi32> to vector<8x128xi32>
    %172 = arith.cmpi eq, %168, %171 : vector<8x128xi32>
    %173 = vector.broadcast %c-2147483647_i32_45 : i32 to vector<8x128xi32>
    %174 = arith.select %172, %173, %168 : vector<8x128xi1>, vector<8x128xi32>
    %c3_i32_52 = arith.constant 3 : i32
    %cst_53 = arith.constant dense<-2147483648> : vector<8xi32>
    %175 = vector.multi_reduction <maxsi>, %174, %cst_53 [1] : vector<8x128xi32> to vector<8xi32>
    %176 = vector.shape_cast %175 : vector<8xi32> to vector<8x1xi32>
    %177 = vector.broadcast %176 : vector<8x1xi32> to vector<8x128xi32>
    %178 = arith.cmpi eq, %174, %177 : vector<8x128xi32>
    %179 = vector.broadcast %c-2147483647_i32_45 : i32 to vector<8x128xi32>
    %180 = arith.select %178, %179, %174 : vector<8x128xi1>, vector<8x128xi32>
    %c4_i32_54 = arith.constant 4 : i32
    %cst_55 = arith.constant dense<-2147483648> : vector<8xi32>
    %181 = vector.multi_reduction <maxsi>, %180, %cst_55 [1] : vector<8x128xi32> to vector<8xi32>
    %182 = vector.shape_cast %181 : vector<8xi32> to vector<8x1xi32>
    %183 = vector.broadcast %182 : vector<8x1xi32> to vector<8x128xi32>
    %184 = arith.cmpi eq, %180, %183 : vector<8x128xi32>
    %185 = vector.broadcast %c-2147483647_i32_45 : i32 to vector<8x128xi32>
    %186 = arith.select %184, %185, %180 : vector<8x128xi1>, vector<8x128xi32>
    %c5_i32_56 = arith.constant 5 : i32
    %cst_57 = arith.constant dense<-2147483648> : vector<8xi32>
    %187 = vector.multi_reduction <maxsi>, %186, %cst_57 [1] : vector<8x128xi32> to vector<8xi32>
    %188 = vector.shape_cast %187 : vector<8xi32> to vector<8x1xi32>
    %189 = vector.broadcast %188 : vector<8x1xi32> to vector<8x128xi32>
    %190 = arith.cmpi eq, %186, %189 : vector<8x128xi32>
    %191 = vector.broadcast %c-2147483647_i32_45 : i32 to vector<8x128xi32>
    %192 = arith.select %190, %191, %186 : vector<8x128xi1>, vector<8x128xi32>
    %c6_i32_58 = arith.constant 6 : i32
    %cst_59 = arith.constant dense<-2147483648> : vector<8xi32>
    %193 = vector.multi_reduction <maxsi>, %192, %cst_59 [1] : vector<8x128xi32> to vector<8xi32>
    %194 = vector.shape_cast %193 : vector<8xi32> to vector<8x1xi32>
    %195 = vector.broadcast %194 : vector<8x1xi32> to vector<8x128xi32>
    %196 = arith.cmpi eq, %192, %195 : vector<8x128xi32>
    %197 = vector.broadcast %c-2147483647_i32_45 : i32 to vector<8x128xi32>
    %198 = arith.select %196, %197, %192 : vector<8x128xi1>, vector<8x128xi32>
    %c7_i32_60 = arith.constant 7 : i32
    %cst_61 = arith.constant dense<-2147483648> : vector<8xi32>
    %199 = vector.multi_reduction <maxsi>, %198, %cst_61 [1] : vector<8x128xi32> to vector<8xi32>
    %200 = vector.shape_cast %199 : vector<8xi32> to vector<8x1xi32>
    %201 = vector.broadcast %200 : vector<8x1xi32> to vector<8x128xi32>
    %202 = arith.cmpi eq, %198, %201 : vector<8x128xi32>
    %203 = vector.broadcast %c-2147483647_i32_45 : i32 to vector<8x128xi32>
    %204 = arith.select %202, %203, %198 : vector<8x128xi1>, vector<8x128xi32>
    %c8_i32_62 = arith.constant 8 : i32
    %cst_63 = arith.constant dense<-2147483648> : vector<8xi32>
    %205 = vector.multi_reduction <maxsi>, %204, %cst_63 [1] : vector<8x128xi32> to vector<8xi32>
    %206 = vector.shape_cast %205 : vector<8xi32> to vector<8x1xi32>
    %207 = vector.broadcast %206 : vector<8x1xi32> to vector<8x128xi32>
    %208 = arith.cmpi eq, %204, %207 : vector<8x128xi32>
    %209 = vector.broadcast %c-2147483647_i32_45 : i32 to vector<8x128xi32>
    %210 = arith.select %208, %209, %204 : vector<8x128xi1>, vector<8x128xi32>
    %c9_i32_64 = arith.constant 9 : i32
    %cst_65 = arith.constant dense<-2147483648> : vector<8xi32>
    %211 = vector.multi_reduction <maxsi>, %210, %cst_65 [1] : vector<8x128xi32> to vector<8xi32>
    %212 = vector.shape_cast %211 : vector<8xi32> to vector<8x1xi32>
    %213 = vector.broadcast %212 : vector<8x1xi32> to vector<8x128xi32>
    %214 = arith.cmpi eq, %210, %213 : vector<8x128xi32>
    %215 = vector.broadcast %c-2147483647_i32_45 : i32 to vector<8x128xi32>
    %216 = arith.select %214, %215, %210 : vector<8x128xi1>, vector<8x128xi32>
    %c10_i32_66 = arith.constant 10 : i32
    %cst_67 = arith.constant dense<-2147483648> : vector<8xi32>
    %217 = vector.multi_reduction <maxsi>, %216, %cst_67 [1] : vector<8x128xi32> to vector<8xi32>
    %218 = vector.shape_cast %217 : vector<8xi32> to vector<8x1xi32>
    %219 = vector.broadcast %218 : vector<8x1xi32> to vector<8x128xi32>
    %220 = arith.cmpi eq, %216, %219 : vector<8x128xi32>
    %221 = vector.broadcast %c-2147483647_i32_45 : i32 to vector<8x128xi32>
    %222 = arith.select %220, %221, %216 : vector<8x128xi1>, vector<8x128xi32>
    %c11_i32_68 = arith.constant 11 : i32
    %cst_69 = arith.constant dense<-2147483648> : vector<8xi32>
    %223 = vector.multi_reduction <maxsi>, %222, %cst_69 [1] : vector<8x128xi32> to vector<8xi32>
    %224 = vector.shape_cast %223 : vector<8xi32> to vector<8x1xi32>
    %225 = vector.broadcast %224 : vector<8x1xi32> to vector<8x128xi32>
    %226 = arith.cmpi eq, %222, %225 : vector<8x128xi32>
    %227 = vector.broadcast %c-2147483647_i32_45 : i32 to vector<8x128xi32>
    %228 = arith.select %226, %227, %222 : vector<8x128xi1>, vector<8x128xi32>
    %c12_i32_70 = arith.constant 12 : i32
    %cst_71 = arith.constant dense<-2147483648> : vector<8xi32>
    %229 = vector.multi_reduction <maxsi>, %228, %cst_71 [1] : vector<8x128xi32> to vector<8xi32>
    %230 = vector.shape_cast %229 : vector<8xi32> to vector<8x1xi32>
    %231 = vector.broadcast %230 : vector<8x1xi32> to vector<8x128xi32>
    %232 = arith.cmpi eq, %228, %231 : vector<8x128xi32>
    %233 = vector.broadcast %c-2147483647_i32_45 : i32 to vector<8x128xi32>
    %234 = arith.select %232, %233, %228 : vector<8x128xi1>, vector<8x128xi32>
    %c13_i32_72 = arith.constant 13 : i32
    %cst_73 = arith.constant dense<-2147483648> : vector<8xi32>
    %235 = vector.multi_reduction <maxsi>, %234, %cst_73 [1] : vector<8x128xi32> to vector<8xi32>
    %236 = vector.shape_cast %235 : vector<8xi32> to vector<8x1xi32>
    %237 = vector.broadcast %236 : vector<8x1xi32> to vector<8x128xi32>
    %238 = arith.cmpi eq, %234, %237 : vector<8x128xi32>
    %239 = vector.broadcast %c-2147483647_i32_45 : i32 to vector<8x128xi32>
    %240 = arith.select %238, %239, %234 : vector<8x128xi1>, vector<8x128xi32>
    %c14_i32_74 = arith.constant 14 : i32
    %cst_75 = arith.constant dense<-2147483648> : vector<8xi32>
    %241 = vector.multi_reduction <maxsi>, %240, %cst_75 [1] : vector<8x128xi32> to vector<8xi32>
    %242 = vector.shape_cast %241 : vector<8xi32> to vector<8x1xi32>
    %243 = vector.broadcast %242 : vector<8x1xi32> to vector<8x128xi32>
    %244 = arith.cmpi eq, %240, %243 : vector<8x128xi32>
    %245 = vector.broadcast %c-2147483647_i32_45 : i32 to vector<8x128xi32>
    %246 = arith.select %244, %245, %240 : vector<8x128xi1>, vector<8x128xi32>
    %c15_i32_76 = arith.constant 15 : i32
    %cst_77 = arith.constant dense<-2147483648> : vector<8xi32>
    %247 = vector.multi_reduction <maxsi>, %246, %cst_77 [1] : vector<8x128xi32> to vector<8xi32>
    %248 = vector.shape_cast %247 : vector<8xi32> to vector<8x1xi32>
    %249 = vector.broadcast %248 : vector<8x1xi32> to vector<8x128xi32>
    %250 = arith.cmpi eq, %246, %249 : vector<8x128xi32>
    %251 = vector.broadcast %c-2147483647_i32_45 : i32 to vector<8x128xi32>
    %252 = arith.select %250, %251, %246 : vector<8x128xi1>, vector<8x128xi32>
    %c-2147483647_i32_78 = arith.constant -2147483647 : i32
    %253 = vector.broadcast %c-2147483647_i32_78 : i32 to vector<8x128xi32>
    %254 = arith.cmpi eq, %252, %253 : vector<8x128xi32>
    %cst_79 = arith.constant 0.000000e+00 : f32
    %255 = vector.broadcast %cst_79 : f32 to vector<8x128xf32>
    %256 = arith.select %254, %146, %255 : vector<8x128xi1>, vector<8x128xf32>
    %c0_80 = arith.constant 0 : index
    %c1_81 = arith.constant 1 : index
    %c0_82 = arith.constant 0 : index
    %c0_83 = arith.constant 0 : index
    %257 = vector.load %arg6[%c0_80, %c1_81, %c0_82, %c0_83] : memref<1x2x16x128xbf16, #tpu.memory_space<vmem>>, vector<1x1x16x128xbf16>
    %258 = vector.shape_cast %257 : vector<1x1x16x128xbf16> to vector<16x128xbf16>
    %259 = arith.truncf %256 : vector<8x128xf32> to vector<8x128xbf16>
    %cst_84 = arith.constant dense<0.000000e+00> : vector<8x16xf32>
    %260 = tpu.matmul %259, %258, %cst_84 {dimension_numbers = #tpu.dot_dimension_numbers<[1], [1], [0], [0], [0, 0, 1, 0], [], []>} : vector<8x128xbf16>, vector<16x128xbf16>, vector<8x16xf32> -> vector<8x16xf32>
    %261 = tpu.concatenate %132, %260 in 1 : vector<8x16xf32>, vector<8x16xf32> -> vector<8x32xf32>
    %c0_85 = arith.constant 0 : index
    %c0_86 = arith.constant 0 : index
    %c0_87 = arith.constant 0 : index
    %c0_88 = arith.constant 0 : index
    %262 = vector.load %arg7[%c0_85, %c0_86, %c0_87, %c0_88] : memref<1x1x8x32xbf16, #tpu.memory_space<vmem>>, vector<1x1x8x32xbf16>
    %263 = vector.shape_cast %262 : vector<1x1x8x32xbf16> to vector<8x32xbf16>
    %264 = arith.extf %263 : vector<8x32xbf16> to vector<8x32xf32>
    %c0_89 = arith.constant 0 : index
    %c0_90 = arith.constant 0 : index
    %c0_91 = arith.constant 0 : index
    %265 = vector.load %arg3[%c0_89, %c0_90, %c0_91] : memref<1x1x32xf32, #tpu.memory_space<vmem>>, vector<1x1x32xf32>
    %266 = vector.shape_cast %265 : vector<1x1x32xf32> to vector<1x32xf32>
    %267 = vector.broadcast %266 : vector<1x32xf32> to vector<8x32xf32>
    %268 = arith.mulf %267, %261 : vector<8x32xf32>
    %cst_92 = arith.constant 1.000000e+00 : f32
    %269 = vector.broadcast %cst_92 : f32 to vector<1x32xf32>
    %270 = arith.subf %269, %266 : vector<1x32xf32>
    %271 = vector.broadcast %270 : vector<1x32xf32> to vector<8x32xf32>
    %272 = arith.mulf %271, %264 : vector<8x32xf32>
    %273 = arith.addf %268, %272 : vector<8x32xf32>
    %274 = arith.truncf %273 : vector<8x32xf32> to vector<8x32xbf16>
    %c0_93 = arith.constant 0 : index
    %c0_94 = arith.constant 0 : index
    %c0_95 = arith.constant 0 : index
    %c0_96 = arith.constant 0 : index
    %275 = vector.load %arg8[%c0_93, %c0_94, %c0_95, %c0_96] : memref<1x1x8x32xbf16, #tpu.memory_space<vmem>>, vector<1x1x8x32xbf16>
    %276 = vector.shape_cast %275 : vector<1x1x8x32xbf16> to vector<8x32xbf16>
    %277 = vector.shape_cast %274 : vector<8x32xbf16> to vector<1x1x8x32xbf16>
    tpu.vector_store %arg8[%c0_93, %c0_94, %c0_95, %c0_96], %277 {strides = array<i32>} : memref<1x1x8x32xbf16, #tpu.memory_space<vmem>>, vector<1x1x8x32xbf16>,
    return
  }
  func.func @transform_0(%arg0: i32, %arg1: i32, %arg2: i32) -> (i32, i32, i32) {
    %c0_i32 = arith.constant 0 : i32
    %c0_i32_0 = arith.constant 0 : i32
    %c0_i32_1 = arith.constant 0 : i32
    return %arg0, %c0_i32, %c0_i32_0 : i32, i32, i32
  }
  func.func @transform_1(%arg0: i32, %arg1: i32, %arg2: i32) -> (i32, i32, i32, i32) {
    %c0_i32 = arith.constant 0 : i32
    %c0_i32_0 = arith.constant 0 : i32
    return %arg1, %arg0, %arg2, %c0_i32 : i32, i32, i32, i32
  }
  func.func @transform_2(%arg0: i32, %arg1: i32, %arg2: i32) -> (i32, i32, i32, i32) {
    %c0_i32 = arith.constant 0 : i32
    %c0_i32_0 = arith.constant 0 : i32
    %c0_i32_1 = arith.constant 0 : i32
    %c0_i32_2 = arith.constant 0 : i32
    return %arg0, %c0_i32, %c0_i32_0, %c0_i32_1 : i32, i32, i32, i32
  }
  func.func @transform_3(%arg0: i32, %arg1: i32, %arg2: i32) -> (i32, i32, i32, i32) {
    %c0_i32 = arith.constant 0 : i32
    %c0_i32_0 = arith.constant 0 : i32
    %c0_i32_1 = arith.constant 0 : i32
    %c0_i32_2 = arith.constant 0 : i32
    return %arg0, %c0_i32, %c0_i32_0, %c0_i32_1 : i32, i32, i32, i32
  }
  func.func @transform_4(%arg0: i32, %arg1: i32, %arg2: i32) -> (i32, i32, i32, i32) {
    %c0_i32 = arith.constant 0 : i32
    %c0_i32_0 = arith.constant 0 : i32
    return %arg1, %arg0, %arg2, %c0_i32 : i32, i32, i32, i32
  }
  func.func @transform_5(%arg0: i32, %arg1: i32, %arg2: i32) -> (i32, i32, i32, i32) {
    %c0_i32 = arith.constant 0 : i32
    %c0_i32_0 = arith.constant 0 : i32
    return %arg1, %arg0, %arg2, %c0_i32 : i32, i32, i32, i32
  }
}

</mosaic_0001>

<llo_original>
// kernel: tpu_custom_call.1
$region0: #{tpu_custom_call.1}
  #allocation0 [shape = 'u32[]', space=smem, size = 0x4, offset = 0x4, fixed_abs, tag = 'smem constant byte address 0x4 - core index']
  #allocation1 [shape = 'u32[72,128]{1,0:T(1,128)}', space=vmem, size = 0x9000, scoped, tag = 'internal scratch']
  %s0 = inlined_call_operand.hbm [shape: f32[1,1,32], index: 0, kind: input, shape index: {}]
  %s1 = inlined_call_operand.hbm [shape: bf16[2,1,8,32], index: 1, kind: input, shape index: {}]
  %s2 = inlined_call_operand.hbm [shape: bf16[1,2,16,128], index: 2, kind: input, shape index: {}]
  %s3 = inlined_call_operand.hbm [shape: bf16[1,2,16,128], index: 3, kind: input, shape index: {}]
  %s4 = inlined_call_operand.hbm [shape: bf16[2,1,8,32], index: 4, kind: input, shape index: {}]
  %s5 = inlined_call_operand.hbm [shape: bf16[2,1,8,32], index: 5, kind: output, shape index: {}]
  %s6 = sld [smem:[#allocation0]]
  $region73: #{tpu_custom_call.1} parent=0
    _
  %s8 = ssub.s32 1, %s6
  %s9 = scalar_select 0, %s8, %s6
  $region1: #{tpu_custom_call.1} parent=0
    #allocation2 [shape = 'u8[512]{0}', space=vmem, size = 0x400, scoped, tag = 'input window, operand 0, single buffered']
    #allocation3 [shape = 's32[2]{0}', space=sflag, size = 0x8, scoped, tag = 'scoped memory for tpu_custom_call.1']
    #allocation4 [shape = 's32[2]{0}', space=sflag, size = 0x8, scoped, tag = 'scoped memory for tpu_custom_call.1']
    #allocation5 [shape = 'u8[4096]{0}', space=vmem, size = 0x1000, scoped, tag = 'input window, operand 1']
    #allocation6 [shape = 's32[2]{0}', space=sflag, size = 0x8, scoped, tag = 'scoped memory for tpu_custom_call.1']
    #allocation7 [shape = 'u8[8192]{0}', space=vmem, size = 0x2000, scoped, tag = 'input window, operand 2, single buffered']
    #allocation8 [shape = 'u8[8192]{0}', space=vmem, size = 0x2000, scoped, tag = 'input window, operand 3, single buffered']
    #allocation9 [shape = 's32[1]{0}', space=sflag, size = 0x4, scoped, tag = 'scoped memory for tpu_custom_call.1']
    #allocation10 [shape = 'u8[4096]{0}', space=vmem, size = 0x1000, scoped, tag = 'input window, operand 4']
    #allocation11 [shape = 'u8[4096]{0}', space=vmem, size = 0x1000, scoped, tag = 'output window, operand 0']
    %10 = vsyncpa [#allocation3], 0
    %11 = vsyncpa [#allocation6], 0
    %s12 = scalar_lea.sflag [#allocation6], 1
    %13 = vsyncpa %s12, 0
    %14 = vsyncpa [#allocation9], 0
    %15 = vsyncpa [#allocation4], 0
    %s16 = scalar_lea.sflag [#allocation4], 1
    %17 = vsyncpa %s16, 0
    loop: start=0, step=1, limit=4
    $region2: #{tpu_custom_call.1} parent=1 // loop_pre_header
      _
    $region3: #{tpu_custom_call.1} parent=1 // loop_header
      %s19 = sphi 0, %s23
      %p20 = scmp.ge.s32.totalorder %s19, 4
      %s26 = sphi 0, %s45
      %s27 = sphi 0, %s41
      %s28 = sphi 0, %s37
      %s29 = sphi 0, %s26
      %s30 = sphi 0, %s27
      %s31 = sphi 0, %s28
      %s32 = sphi 0, %s29
      %s33 = sphi 0, %s30
      %s34 = sphi 0, %s31
      %s48 = sphi 0, %s50
      %s51 = sphi 0, %s48
      %s52 = sphi 0, %s51
      %s68 = sphi 0, %s52
      %s78 = sphi 0, %s80
      %s81 = sphi 0, %s78
      %s82 = sphi 0, %s81
      %s98 = sphi 0, %s82
      %s104 = sphi 0, %s106
      %s107 = sphi 0, %s104
      %s108 = sphi 0, %s107
      %s124 = sphi 0, %s108
      %s130 = sphi 0, %s132
      %s133 = sphi 0, %s130
      %s134 = sphi 0, %s133
      %s150 = sphi 0, %s134
      %s160 = sphi 0, %s162
      %s163 = sphi 0, %s160
      %s164 = sphi 0, %s163
      %s180 = sphi 0, %s164
      %s190 = sphi 0, %s192
      %s193 = sphi 0, %s190
      %s194 = sphi 0, %s193
      %s210 = sphi 0, %s194
    $region4: #{tpu_custom_call.1} parent=1 // loop_header_branch
      %22 = sbr.rel (%p20) target = $region8
    $region5: #{tpu_custom_call.1} parent=1 // loop_body
      %s24 = ssub.s32 %s19, 1
      %s25 = ssub.s32 %s19, 2
      %s35 = sadd.s32 1, %s28
      %p36 = scmp.ge.s32.totalorder %s35, 1
      %s37 = scalar_select %p36, 0, %s35
      %s38 = sadd.s32 1, %s27
      %s39 = scalar_select %p36, %s38, %s27
      %p40 = scmp.ge.s32.totalorder %s39, 2
      %s41 = scalar_select %p40, 0, %s39
      %s42 = sadd.s32 1, %s26
      %s43 = scalar_select %p40, %s42, %s26
      %p44 = scmp.ge.s32.totalorder %s43, 1
      %s45 = scalar_select %p44, 0, %s43
      %s46 = ssub.s32 %s26, %s45
      %p47 = scmp.eq.s32.totalorder %s46, 0
      %s49 = sadd.s32 %s48, 1
      %s50 = scalar_select %p47, %s48, %s49
      %p53 = pneg %p47
      %p54 = scmp.eq.s32.totalorder %s19, 1
      %p55 = por %p53, %p54
      %p56 = scmp.ne.s32.totalorder %s48, %s51
      %p57 = scmp.eq.s32.totalorder %s19, 0
      %p58 = por %p56, %p57
      %p59 = scmp.ne.s32.totalorder %s48, %s51
      %p60 = scmp.eq.s32.totalorder %s24, 1
      %p61 = por %p59, %p60
      %p62 = scmp.ne.s32.totalorder %s51, %s52
      %p63 = scmp.eq.s32.totalorder %s24, 0
      %p64 = por %p62, %p63
      %p65 = scmp.ne.s32.totalorder %s51, %s52
      %p66 = scmp.eq.s32.totalorder %s25, 1
      %p67 = por %p65, %p66
      %p69 = scmp.ne.s32.totalorder %s52, %s68
      %p70 = scmp.eq.s32.totalorder %s25, 0
      %p71 = por %p69, %p70
      %s72 = ssub.s32 %s27, %s41
      %s73 = ssub.s32 %s26, %s45
      %s74 = sor.u32 %s72, %s73
      %s75 = ssub.s32 %s28, %s37
      %s76 = sor.u32 %s74, %s75
      %p77 = scmp.eq.s32.totalorder %s76, 0
      %s79 = sadd.s32 %s78, 1
      %s80 = scalar_select %p77, %s78, %s79
      %p83 = pneg %p77
      %p84 = scmp.eq.s32.totalorder %s19, 1
      %p85 = por %p83, %p84
      %p86 = scmp.ne.s32.totalorder %s78, %s81
      %p87 = scmp.eq.s32.totalorder %s19, 0
      %p88 = por %p86, %p87
      %p89 = scmp.ne.s32.totalorder %s78, %s81
      %p90 = scmp.eq.s32.totalorder %s24, 1
      %p91 = por %p89, %p90
      %p92 = scmp.ne.s32.totalorder %s81, %s82
      %p93 = scmp.eq.s32.totalorder %s24, 0
      %p94 = por %p92, %p93
      %p95 = scmp.ne.s32.totalorder %s81, %s82
      %p96 = scmp.eq.s32.totalorder %s25, 1
      %p97 = por %p95, %p96
      %p99 = scmp.ne.s32.totalorder %s82, %s98
      %p100 = scmp.eq.s32.totalorder %s25, 0
      %p101 = por %p99, %p100
      %s102 = ssub.s32 %s26, %s45
      %p103 = scmp.eq.s32.totalorder %s102, 0
      %s105 = sadd.s32 %s104, 1
      %s106 = scalar_select %p103, %s104, %s105
      %p109 = pneg %p103
      %p110 = scmp.eq.s32.totalorder %s19, 1
      %p111 = por %p109, %p110
      %p112 = scmp.ne.s32.totalorder %s104, %s107
      %p113 = scmp.eq.s32.totalorder %s19, 0
      %p114 = por %p112, %p113
      %p115 = scmp.ne.s32.totalorder %s104, %s107
      %p116 = scmp.eq.s32.totalorder %s24, 1
      %p117 = por %p115, %p116
      %p118 = scmp.ne.s32.totalorder %s107, %s108
      %p119 = scmp.eq.s32.totalorder %s24, 0
      %p120 = por %p118, %p119
      %p121 = scmp.ne.s32.totalorder %s107, %s108
      %p122 = scmp.eq.s32.totalorder %s25, 1
      %p123 = por %p121, %p122
      %p125 = scmp.ne.s32.totalorder %s108, %s124
      %p126 = scmp.eq.s32.totalorder %s25, 0
      %p127 = por %p125, %p126
      %s128 = ssub.s32 %s26, %s45
      %p129 = scmp.eq.s32.totalorder %s128, 0
      %s131 = sadd.s32 %s130, 1
      %s132 = scalar_select %p129, %s130, %s131
      %p135 = pneg %p129
      %p136 = scmp.eq.s32.totalorder %s19, 1
      %p137 = por %p135, %p136
      %p138 = scmp.ne.s32.totalorder %s130, %s133
      %p139 = scmp.eq.s32.totalorder %s19, 0
      %p140 = por %p138, %p139
      %p141 = scmp.ne.s32.totalorder %s130, %s133
      %p142 = scmp.eq.s32.totalorder %s24, 1
      %p143 = por %p141, %p142
      %p144 = scmp.ne.s32.totalorder %s133, %s134
      %p145 = scmp.eq.s32.totalorder %s24, 0
      %p146 = por %p144, %p145
      %p147 = scmp.ne.s32.totalorder %s133, %s134
      %p148 = scmp.eq.s32.totalorder %s25, 1
      %p149 = por %p147, %p148
      %p151 = scmp.ne.s32.totalorder %s134, %s150
      %p152 = scmp.eq.s32.totalorder %s25, 0
      %p153 = por %p151, %p152
      %s154 = ssub.s32 %s27, %s41
      %s155 = ssub.s32 %s26, %s45
      %s156 = sor.u32 %s154, %s155
      %s157 = ssub.s32 %s28, %s37
      %s158 = sor.u32 %s156, %s157
      %p159 = scmp.eq.s32.totalorder %s158, 0
      %s161 = sadd.s32 %s160, 1
      %s162 = scalar_select %p159, %s160, %s161
      %p165 = pneg %p159
      %p166 = scmp.eq.s32.totalorder %s19, 1
      %p167 = por %p165, %p166
      %p168 = scmp.ne.s32.totalorder %s160, %s163
      %p169 = scmp.eq.s32.totalorder %s19, 0
      %p170 = por %p168, %p169
      %p171 = scmp.ne.s32.totalorder %s160, %s163
      %p172 = scmp.eq.s32.totalorder %s24, 1
      %p173 = por %p171, %p172
      %p174 = scmp.ne.s32.totalorder %s163, %s164
      %p175 = scmp.eq.s32.totalorder %s24, 0
      %p176 = por %p174, %p175
      %p177 = scmp.ne.s32.totalorder %s163, %s164
      %p178 = scmp.eq.s32.totalorder %s25, 1
      %p179 = por %p177, %p178
      %p181 = scmp.ne.s32.totalorder %s164, %s180
      %p182 = scmp.eq.s32.totalorder %s25, 0
      %p183 = por %p181, %p182
      %s184 = ssub.s32 %s27, %s41
      %s185 = ssub.s32 %s26, %s45
      %s186 = sor.u32 %s184, %s185
      %s187 = ssub.s32 %s28, %s37
      %s188 = sor.u32 %s186, %s187
      %p189 = scmp.eq.s32.totalorder %s188, 0
      %s191 = sadd.s32 %s190, 1
      %s192 = scalar_select %p189, %s190, %s191
      %p195 = pneg %p189
      %p196 = scmp.eq.s32.totalorder %s19, 1
      %p197 = por %p195, %p196
      %p198 = scmp.ne.s32.totalorder %s190, %s193
      %p199 = scmp.eq.s32.totalorder %s19, 0
      %p200 = por %p198, %p199
      %p201 = scmp.ne.s32.totalorder %s190, %s193
      %p202 = scmp.eq.s32.totalorder %s24, 1
      %p203 = por %p201, %p202
      %p204 = scmp.ne.s32.totalorder %s193, %s194
      %p205 = scmp.eq.s32.totalorder %s24, 0
      %p206 = por %p204, %p205
      %p207 = scmp.ne.s32.totalorder %s193, %s194
      %p208 = scmp.eq.s32.totalorder %s25, 1
      %p209 = por %p207, %p208
      %p211 = scmp.ne.s32.totalorder %s194, %s210
      %p212 = scmp.eq.s32.totalorder %s25, 0
      %p213 = por %p211, %p212
      %p214 = scmp.le.s32.totalorder 1, %s19
      %p215 = scmp.lt.s32.totalorder %s19, 3
      %p216 = pnand %p214, %p215
      %p217 = pneg %p216
      // Predicated region
      $region9: #{tpu_custom_call.1} parent=5 // pred_check
        _
      $region10: #{tpu_custom_call.1} parent=5 // pred_check_branch
        %219 = sbr.rel (%p216) target = $region12
      $region11: #{tpu_custom_call.1} parent=5 // pred_region
        %s220 = ssub.s32 %s19, 1
        // Predicated region
        $region13: #{tpu_custom_call.1} parent=11 // pred_check
          %p221 = pneg %p64
        $region14: #{tpu_custom_call.1} parent=11 // pred_check_branch
          %223 = sbr.rel (%p221) target = $region16
        $region15: #{tpu_custom_call.1} parent=11 // pred_region
          %225 = vsyncadd [#allocation3], 0
          %s226 = scalar_lea.hbm %s0, %s29
          %s228 = sshll.u32 %s226, 4
          %s229 = int_to_ptr.hbm [resolvable:$true] %s228
          %s230 = sshll.u32 [#allocation2], 4
          %s231 = int_to_ptr.vmem [resolvable:$true] %s230
          %233 = dma.hbm_to_vmem [thread:$0]  %s229, 16, %s231, [#allocation3]
        $region16: #{tpu_custom_call.1} parent=11 // pred_fallthru
          _
        // Predicated region
        $region17: #{tpu_custom_call.1} parent=11 // pred_check
          %p234 = pneg %p120
        $region18: #{tpu_custom_call.1} parent=11 // pred_check_branch
          %236 = sbr.rel (%p234) target = $region20
        $region19: #{tpu_custom_call.1} parent=11 // pred_region
          %238 = vsyncadd [#allocation6], 0
          %s239 = smul.addr %s29, 4
          %s240 = smul.addr %s239, 4
          %s241 = scalar_lea.hbm %s2, %s240
          %s242 = sshll.u32 %s241, 4
          %s243 = int_to_ptr.hbm [resolvable:$true] %s242
          %s244 = sshll.u32 [#allocation7], 4
          %s245 = int_to_ptr.vmem [resolvable:$true] %s244
          %250 = dma.hbm_to_vmem [thread:$0]  %s243, 256, %s245, [#allocation6], 64, 64, 4
        $region20: #{tpu_custom_call.1} parent=11 // pred_fallthru
          _
        // Predicated region
        $region21: #{tpu_custom_call.1} parent=11 // pred_check
          %p251 = pneg %p146
        $region22: #{tpu_custom_call.1} parent=11 // pred_check_branch
          %253 = sbr.rel (%p251) target = $region24
        $region23: #{tpu_custom_call.1} parent=11 // pred_region
          %255 = vsyncadd [#allocation9], 0
          %s256 = smul.addr %s29, 4
          %s257 = smul.addr %s256, 4
          %s258 = scalar_lea.hbm %s3, %s257
          %s259 = sshll.u32 %s258, 4
          %s260 = int_to_ptr.hbm [resolvable:$true] %s259
          %s261 = sshll.u32 [#allocation8], 4
          %s262 = int_to_ptr.vmem [resolvable:$true] %s261
          %267 = dma.hbm_to_vmem [thread:$0]  %s260, 256, %s262, [#allocation9], 64, 64, 4
        $region24: #{tpu_custom_call.1} parent=11 // pred_fallthru
          _
      $region12: #{tpu_custom_call.1} parent=5 // pred_fallthru
        _
      %p268 = scmp.lt.s32.totalorder %s19, 2
      // Predicated region
      $region25: #{tpu_custom_call.1} parent=5 // pred_check
        %p269 = pneg %p268
      $region26: #{tpu_custom_call.1} parent=5 // pred_check_branch
        %271 = sbr.rel (%p269) target = $region28
      $region27: #{tpu_custom_call.1} parent=5 // pred_region
        // Predicated region
        $region29: #{tpu_custom_call.1} parent=27 // pred_check
          %p272 = pneg %p88
        $region30: #{tpu_custom_call.1} parent=27 // pred_check_branch
          %274 = sbr.rel (%p272) target = $region32
        $region31: #{tpu_custom_call.1} parent=27 // pred_region
          %s275 = sand.u32 %s19, 1
          %s276 = scalar_lea.sflag [#allocation6], %s275
          %s277 = sand.u32 %s78, 1
          %s278 = smul.addr %s277, 4
          %s279 = scalar_lea.vmem [#allocation5], %s278
          %281 = vsyncadd %s276, 0
          %s282 = sadd.s32 %s28, %s26
          %s283 = sadd.s32 %s282, %s27
          %s284 = smul.addr %s283, 4
          %s285 = scalar_lea.hbm %s1, %s284
          %s287 = sshll.u32 %s285, 4
          %s288 = int_to_ptr.hbm [resolvable:$true] %s287
          %s289 = sshll.u32 %s279, 4
          %s290 = int_to_ptr.vmem [resolvable:$true] %s289
          %292 = dma.hbm_to_vmem [thread:$0]  %s288, 64, %s290, %s276
        $region32: #{tpu_custom_call.1} parent=27 // pred_fallthru
          _
        // Predicated region
        $region33: #{tpu_custom_call.1} parent=27 // pred_check
          %p293 = pneg %p170
        $region34: #{tpu_custom_call.1} parent=27 // pred_check_branch
          %295 = sbr.rel (%p293) target = $region36
        $region35: #{tpu_custom_call.1} parent=27 // pred_region
          %s296 = sand.u32 %s19, 1
          %s297 = scalar_lea.sflag [#allocation3], %s296
          %s298 = sand.u32 %s160, 1
          %s299 = smul.addr %s298, 4
          %s300 = scalar_lea.vmem [#allocation10], %s299
          %302 = vsyncadd %s297, 0
          %s303 = sadd.s32 %s28, %s26
          %s304 = sadd.s32 %s303, %s27
          %s305 = smul.addr %s304, 4
          %s306 = scalar_lea.hbm %s4, %s305
          %s308 = sshll.u32 %s306, 4
          %s309 = int_to_ptr.hbm [resolvable:$true] %s308
          %s310 = sshll.u32 %s300, 4
          %s311 = int_to_ptr.vmem [resolvable:$true] %s310
          %313 = dma.hbm_to_vmem [thread:$0]  %s309, 64, %s311, %s297
        $region36: #{tpu_custom_call.1} parent=27 // pred_fallthru
          _
      $region28: #{tpu_custom_call.1} parent=5 // pred_fallthru
        _
      %p314 = scmp.le.s32.totalorder 1, %s19
      %p315 = scmp.lt.s32.totalorder %s19, 3
      %p316 = pnand %p314, %p315
      %p317 = pneg %p316
      // Predicated region
      $region37: #{tpu_custom_call.1} parent=5 // pred_check
        _
      $region38: #{tpu_custom_call.1} parent=5 // pred_check_branch
        %319 = sbr.rel (%p316) target = $region40
      $region39: #{tpu_custom_call.1} parent=5 // pred_region
        %s320 = ssub.s32 %s19, 1
        // Predicated region
        $region41: #{tpu_custom_call.1} parent=39 // pred_check
          %p321 = pneg %p64
        $region42: #{tpu_custom_call.1} parent=39 // pred_check_branch
          %323 = sbr.rel (%p321) target = $region44
        $region43: #{tpu_custom_call.1} parent=39 // pred_region
          %325 = dma.done [#allocation3], 16
        $region44: #{tpu_custom_call.1} parent=39 // pred_fallthru
          _
        %s326 = sand.u32 %s24, 1
        %s327 = scalar_lea.sflag [#allocation6], %s326
        %s328 = sand.u32 %s81, 1
        %s329 = smul.addr %s328, 4
        %s330 = scalar_lea.vmem [#allocation5], %s329
        // Predicated region
        $region45: #{tpu_custom_call.1} parent=39 // pred_check
          %p331 = pneg %p94
        $region46: #{tpu_custom_call.1} parent=39 // pred_check_branch
          %333 = sbr.rel (%p331) target = $region48
        $region47: #{tpu_custom_call.1} parent=39 // pred_region
          %335 = dma.done %s327, 64
        $region48: #{tpu_custom_call.1} parent=39 // pred_fallthru
          _
        // Predicated region
        $region49: #{tpu_custom_call.1} parent=39 // pred_check
          %p336 = pneg %p120
        $region50: #{tpu_custom_call.1} parent=39 // pred_check_branch
          %338 = sbr.rel (%p336) target = $region52
        $region51: #{tpu_custom_call.1} parent=39 // pred_region
          %340 = dma.done [#allocation6], 256
        $region52: #{tpu_custom_call.1} parent=39 // pred_fallthru
          _
        // Predicated region
        $region53: #{tpu_custom_call.1} parent=39 // pred_check
          %p341 = pneg %p146
        $region54: #{tpu_custom_call.1} parent=39 // pred_check_branch
          %343 = sbr.rel (%p341) target = $region56
        $region55: #{tpu_custom_call.1} parent=39 // pred_region
          %345 = dma.done [#allocation9], 256
        $region56: #{tpu_custom_call.1} parent=39 // pred_fallthru
          _
        %s346 = sand.u32 %s24, 1
        %s347 = scalar_lea.sflag [#allocation3], %s346
        %s348 = sand.u32 %s163, 1
        %s349 = smul.addr %s348, 4
        %s350 = scalar_lea.vmem [#allocation10], %s349
        // Predicated region
        $region57: #{tpu_custom_call.1} parent=39 // pred_check
          %p351 = pneg %p176
        $region58: #{tpu_custom_call.1} parent=39 // pred_check_branch
          %353 = sbr.rel (%p351) target = $region60
        $region59: #{tpu_custom_call.1} parent=39 // pred_region
          %355 = dma.done %s347, 64
        $region60: #{tpu_custom_call.1} parent=39 // pred_fallthru
          _
        %p356 = pneg %p64
        %p357 = pneg %p61
        %s358 = sand.u32 %s24, 1
        %s359 = scalar_lea.sflag [#allocation6], %s358
        %s360 = sand.u32 %s81, 1
        %s361 = smul.addr %s360, 4
        %s362 = scalar_lea.vmem [#allocation5], %s361
        %p363 = pneg %p94
        %p364 = pneg %p91
        %p365 = pneg %p120
        %p366 = pneg %p117
        %p367 = pneg %p146
        %p368 = pneg %p143
        %s369 = sand.u32 %s24, 1
        %s370 = scalar_lea.sflag [#allocation3], %s369
        %s371 = sand.u32 %s163, 1
        %s372 = smul.addr %s371, 4
        %s373 = scalar_lea.vmem [#allocation10], %s372
        %p374 = pneg %p176
        %p375 = pneg %p173
        %p376 = pneg %p206
        %p377 = pneg %p203
        %s378 = sand.u32 %s193, 1
        %s379 = scalar_lea.sflag [#allocation4], %s378
        %s380 = sand.u32 %s193, 1
        %s381 = smul.addr %s380, 4
        %s382 = scalar_lea.vmem [#allocation11], %s381
        %v384 = vld [vmem:[%s330] sm:$0xf]
        %v385 = vlaneseq
        %v386 = vand.u32 %v385, 127
        %v387 = vsub.s32 127, %v386
        %v388 = vunpack.c.l.bf16 %v384
        %v389 = vmul.f32 %v388, %v388
        %vm390 = vcmask 130048
        %v391 = vsel %vm390, %v389, 0.0
        %392 = vadd.xlane.f32.xlu0 %v391
        %v393 = vpop.xlane.xlu0 %392
        %v394 = vmax.f32 %v393, 1e-24
        %v395 = vrsqrt.pop %v394
        %v396 = vmul.f32 %v395, %v394
        %v397 = vmul.f32 %v396, %v395
        %v398 = vmul.f32 0.5, %v397
        %v399 = vsub.f32 1.5, %v398
        %v400 = vmul.f32 %v395, %v399
        %vm401 = vweird.f32 %v394
        %vm402 = vweird.f32 %v395
        %vm403 = vmor %vm401, %vm402
        %v404 = vsel %vm403, %v395, %v400
        %v405 = vmul.f32 %v388, %v404
        %v406 = vpack.c.bf16 %v405, %v405
        %v407 = vld [vmem:[#allocation7] sm:$0xf]
        %v408 = vld [vmem:[#allocation7 + $0x4] sm:$0xf]
        %v411 = vunpack.c.l.b16 %v407
        %v412 = vunpack.c.l.b16 %v408
        %v413 = vpack.c.b16 %v412, %v411
        %v416 = vsel %vm390, %v406, 0
        %418 = vmatpush.bf16.msra.mxu0 0
        %419 = vmatpush.bf16.msra.mxu0 0
        %420 = vmatpush.bf16.msra.mxu0 0
        %421 = vmatpush.bf16.msra.mxu0 0
        %422 = vmatpush.bf16.msra.mxu0 0
        %423 = vmatpush.bf16.msra.mxu0 0
        %424 = vmatpush.bf16.msra.mxu0 0
        %425 = vmatpush.bf16.msra.mxu0 %v413
        %426 = vmatmul.bf16.gmra.mxu0 %v416
        %v427 = vpop.f32.mrf.mxu0
        %v428 = vadd.f32 0.0, %v427
        %v429 = vpop.f32.mrf.mxu0
        %430 = vdwg.mxu0
        %v431 = vmax.f32 %v428, -1.5
        %v432 = vmin.f32 %v431, 1.5
        %v433 = vmul.f32 %v432, 8388608.0
        %v434 = vcvt.f32.s32.to.zero.pseudo %v433
        %v435 = vmul.u32 %v434, 128
        %v436 = vadd.s32 %v435, %v387
        %v437 = vand.u32 %v436, 65535
        %v438 = vshra.s32 %v436, 16
        %v439 = vcvt.s32.f32 %v437
        %v440 = vcvt.s32.f32 %v438
        %441 = vmax.xlane.f32.xlu0 %v440
        %v442 = vpop.xlane.xlu0 %441
        %vm443 = vcmp.eq.f32.partialorder %v440, %v442
        %v444 = vsel %vm443, %v439, -inf
        %445 = vmax.xlane.f32.xlu0 %v444
        %v446 = vpop.xlane.xlu0 %445
        %v447 = vcvt.f32.s32 %v446
        %v448 = vcvt.f32.s32 %v442
        %v449 = vshll.u32 %v448, 16
        %v450 = vadd.s32 %v449, %v447
        %vm451 = vcmp.eq.s32.totalorder %v436, %v450
        %v452 = vsel %vm451, 2147483649, %v436
        %v453 = vand.u32 %v452, 65535
        %v454 = vshra.s32 %v452, 16
        %v455 = vcvt.s32.f32 %v453
        %v456 = vcvt.s32.f32 %v454
        %457 = vmax.xlane.f32.xlu0 %v456
        %v458 = vpop.xlane.xlu0 %457
        %vm459 = vcmp.eq.f32.partialorder %v456, %v458
        %v460 = vsel %vm459, %v455, -inf
        %461 = vmax.xlane.f32.xlu0 %v460
        %v462 = vpop.xlane.xlu0 %461
        %v463 = vcvt.f32.s32 %v462
        %v464 = vcvt.f32.s32 %v458
        %v465 = vshll.u32 %v464, 16
        %v466 = vadd.s32 %v465, %v463
        %vm467 = vcmp.eq.s32.totalorder %v452, %v466
        %v468 = vsel %vm467, 2147483649, %v452
        %v469 = vand.u32 %v468, 65535
        %v470 = vshra.s32 %v468, 16
        %v471 = vcvt.s32.f32 %v469
        %v472 = vcvt.s32.f32 %v470
        %473 = vmax.xlane.f32.xlu0 %v472
        %v474 = vpop.xlane.xlu0 %473
        %vm475 = vcmp.eq.f32.partialorder %v472, %v474
        %v476 = vsel %vm475, %v471, -inf
        %477 = vmax.xlane.f32.xlu0 %v476
        %v478 = vpop.xlane.xlu0 %477
        %v479 = vcvt.f32.s32 %v478
        %v480 = vcvt.f32.s32 %v474
        %v481 = vshll.u32 %v480, 16
        %v482 = vadd.s32 %v481, %v479
        %vm483 = vcmp.eq.s32.totalorder %v468, %v482
        %v484 = vsel %vm483, 2147483649, %v468
        %v485 = vand.u32 %v484, 65535
        %v486 = vshra.s32 %v484, 16
        %v487 = vcvt.s32.f32 %v485
        %v488 = vcvt.s32.f32 %v486
        %489 = vmax.xlane.f32.xlu0 %v488
        %v490 = vpop.xlane.xlu0 %489
        %vm491 = vcmp.eq.f32.partialorder %v488, %v490
        %v492 = vsel %vm491, %v487, -inf
        %493 = vmax.xlane.f32.xlu0 %v492
        %v494 = vpop.xlane.xlu0 %493
        %v495 = vcvt.f32.s32 %v494
        %v496 = vcvt.f32.s32 %v490
        %v497 = vshll.u32 %v496, 16
        %v498 = vadd.s32 %v497, %v495
        %vm499 = vcmp.eq.s32.totalorder %v484, %v498
        %v500 = vsel %vm499, 2147483649, %v484
        %v501 = vand.u32 %v500, 65535
        %v502 = vshra.s32 %v500, 16
        %v503 = vcvt.s32.f32 %v501
        %v504 = vcvt.s32.f32 %v502
        %505 = vmax.xlane.f32.xlu0 %v504
        %v506 = vpop.xlane.xlu0 %505
        %vm507 = vcmp.eq.f32.partialorder %v504, %v506
        %v508 = vsel %vm507, %v503, -inf
        %509 = vmax.xlane.f32.xlu0 %v508
        %v510 = vpop.xlane.xlu0 %509
        %v511 = vcvt.f32.s32 %v510
        %v512 = vcvt.f32.s32 %v506
        %v513 = vshll.u32 %v512, 16
        %v514 = vadd.s32 %v513, %v511
        %vm515 = vcmp.eq.s32.totalorder %v500, %v514
        %v516 = vsel %vm515, 2147483649, %v500
        %v517 = vand.u32 %v516, 65535
        %v518 = vshra.s32 %v516, 16
        %v519 = vcvt.s32.f32 %v517
        %v520 = vcvt.s32.f32 %v518
        %521 = vmax.xlane.f32.xlu0 %v520
        %v522 = vpop.xlane.xlu0 %521
        %vm523 = vcmp.eq.f32.partialorder %v520, %v522
        %v524 = vsel %vm523, %v519, -inf
        %525 = vmax.xlane.f32.xlu0 %v524
        %v526 = vpop.xlane.xlu0 %525
        %v527 = vcvt.f32.s32 %v526
        %v528 = vcvt.f32.s32 %v522
        %v529 = vshll.u32 %v528, 16
        %v530 = vadd.s32 %v529, %v527
        %vm531 = vcmp.eq.s32.totalorder %v516, %v530
        %v532 = vsel %vm531, 2147483649, %v516
        %v533 = vand.u32 %v532, 65535
        %v534 = vshra.s32 %v532, 16
        %v535 = vcvt.s32.f32 %v533
        %v536 = vcvt.s32.f32 %v534
        %537 = vmax.xlane.f32.xlu0 %v536
        %v538 = vpop.xlane.xlu0 %537
        %vm539 = vcmp.eq.f32.partialorder %v536, %v538
        %v540 = vsel %vm539, %v535, -inf
        %541 = vmax.xlane.f32.xlu0 %v540
        %v542 = vpop.xlane.xlu0 %541
        %v543 = vcvt.f32.s32 %v542
        %v544 = vcvt.f32.s32 %v538
        %v545 = vshll.u32 %v544, 16
        %v546 = vadd.s32 %v545, %v543
        %vm547 = vcmp.eq.s32.totalorder %v532, %v546
        %v548 = vsel %vm547, 2147483649, %v532
        %v549 = vand.u32 %v548, 65535
        %v550 = vshra.s32 %v548, 16
        %v551 = vcvt.s32.f32 %v549
        %v552 = vcvt.s32.f32 %v550
        %553 = vmax.xlane.f32.xlu0 %v552
        %v554 = vpop.xlane.xlu0 %553
        %vm555 = vcmp.eq.f32.partialorder %v552, %v554
        %v556 = vsel %vm555, %v551, -inf
        %557 = vmax.xlane.f32.xlu0 %v556
        %v558 = vpop.xlane.xlu0 %557
        %v559 = vcvt.f32.s32 %v558
        %v560 = vcvt.f32.s32 %v554
        %v561 = vshll.u32 %v560, 16
        %v562 = vadd.s32 %v561, %v559
        %vm563 = vcmp.eq.s32.totalorder %v548, %v562
        %v564 = vsel %vm563, 2147483649, %v548
        %v565 = vand.u32 %v564, 65535
        %v566 = vshra.s32 %v564, 16
        %v567 = vcvt.s32.f32 %v565
        %v568 = vcvt.s32.f32 %v566
        %569 = vmax.xlane.f32.xlu0 %v568
        %v570 = vpop.xlane.xlu0 %569
        %vm571 = vcmp.eq.f32.partialorder %v568, %v570
        %v572 = vsel %vm571, %v567, -inf
        %573 = vmax.xlane.f32.xlu0 %v572
        %v574 = vpop.xlane.xlu0 %573
        %v575 = vcvt.f32.s32 %v574
        %v576 = vcvt.f32.s32 %v570
        %v577 = vshll.u32 %v576, 16
        %v578 = vadd.s32 %v577, %v575
        %vm579 = vcmp.eq.s32.totalorder %v564, %v578
        %v580 = vsel %vm579, 2147483649, %v564
        %v581 = vand.u32 %v580, 65535
        %v582 = vshra.s32 %v580, 16
        %v583 = vcvt.s32.f32 %v581
        %v584 = vcvt.s32.f32 %v582
        %585 = vmax.xlane.f32.xlu0 %v584
        %v586 = vpop.xlane.xlu0 %585
        %vm587 = vcmp.eq.f32.partialorder %v584, %v586
        %v588 = vsel %vm587, %v583, -inf
        %589 = vmax.xlane.f32.xlu0 %v588
        %v590 = vpop.xlane.xlu0 %589
        %v591 = vcvt.f32.s32 %v590
        %v592 = vcvt.f32.s32 %v586
        %v593 = vshll.u32 %v592, 16
        %v594 = vadd.s32 %v593, %v591
        %vm595 = vcmp.eq.s32.totalorder %v580, %v594
        %v596 = vsel %vm595, 2147483649, %v580
        %v597 = vand.u32 %v596, 65535
        %v598 = vshra.s32 %v596, 16
        %v599 = vcvt.s32.f32 %v597
        %v600 = vcvt.s32.f32 %v598
        %601 = vmax.xlane.f32.xlu0 %v600
        %v602 = vpop.xlane.xlu0 %601
        %vm603 = vcmp.eq.f32.partialorder %v600, %v602
        %v604 = vsel %vm603, %v599, -inf
        %605 = vmax.xlane.f32.xlu0 %v604
        %v606 = vpop.xlane.xlu0 %605
        %v607 = vcvt.f32.s32 %v606
        %v608 = vcvt.f32.s32 %v602
        %v609 = vshll.u32 %v608, 16
        %v610 = vadd.s32 %v609, %v607
        %vm611 = vcmp.eq.s32.totalorder %v596, %v610
        %v612 = vsel %vm611, 2147483649, %v596
        %v613 = vand.u32 %v612, 65535
        %v614 = vshra.s32 %v612, 16
        %v615 = vcvt.s32.f32 %v613
        %v616 = vcvt.s32.f32 %v614
        %617 = vmax.xlane.f32.xlu0 %v616
        %v618 = vpop.xlane.xlu0 %617
        %vm619 = vcmp.eq.f32.partialorder %v616, %v618
        %v620 = vsel %vm619, %v615, -inf
        %621 = vmax.xlane.f32.xlu0 %v620
        %v622 = vpop.xlane.xlu0 %621
        %v623 = vcvt.f32.s32 %v622
        %v624 = vcvt.f32.s32 %v618
        %v625 = vshll.u32 %v624, 16
        %v626 = vadd.s32 %v625, %v623
        %vm627 = vcmp.eq.s32.totalorder %v612, %v626
        %v628 = vsel %vm627, 2147483649, %v612
        %v629 = vand.u32 %v628, 65535
        %v630 = vshra.s32 %v628, 16
        %v631 = vcvt.s32.f32 %v629
        %v632 = vcvt.s32.f32 %v630
        %633 = vmax.xlane.f32.xlu0 %v632
        %v634 = vpop.xlane.xlu0 %633
        %vm635 = vcmp.eq.f32.partialorder %v632, %v634
        %v636 = vsel %vm635, %v631, -inf
        %637 = vmax.xlane.f32.xlu0 %v636
        %v638 = vpop.xlane.xlu0 %637
        %v639 = vcvt.f32.s32 %v638
        %v640 = vcvt.f32.s32 %v634
        %v641 = vshll.u32 %v640, 16
        %v642 = vadd.s32 %v641, %v639
        %vm643 = vcmp.eq.s32.totalorder %v628, %v642
        %v644 = vsel %vm643, 2147483649, %v628
        %v645 = vand.u32 %v644, 65535
        %v646 = vshra.s32 %v644, 16
        %v647 = vcvt.s32.f32 %v645
        %v648 = vcvt.s32.f32 %v646
        %649 = vmax.xlane.f32.xlu0 %v648
        %v650 = vpop.xlane.xlu0 %649
        %vm651 = vcmp.eq.f32.partialorder %v648, %v650
        %v652 = vsel %vm651, %v647, -inf
        %653 = vmax.xlane.f32.xlu0 %v652
        %v654 = vpop.xlane.xlu0 %653
        %v655 = vcvt.f32.s32 %v654
        %v656 = vcvt.f32.s32 %v650
        %v657 = vshll.u32 %v656, 16
        %v658 = vadd.s32 %v657, %v655
        %vm659 = vcmp.eq.s32.totalorder %v644, %v658
        %v660 = vsel %vm659, 2147483649, %v644
        %v661 = vand.u32 %v660, 65535
        %v662 = vshra.s32 %v660, 16
        %v663 = vcvt.s32.f32 %v661
        %v664 = vcvt.s32.f32 %v662
        %665 = vmax.xlane.f32.xlu0 %v664
        %v666 = vpop.xlane.xlu0 %665
        %vm667 = vcmp.eq.f32.partialorder %v664, %v666
        %v668 = vsel %vm667, %v663, -inf
        %669 = vmax.xlane.f32.xlu0 %v668
        %v670 = vpop.xlane.xlu0 %669
        %v671 = vcvt.f32.s32 %v670
        %v672 = vcvt.f32.s32 %v666
        %v673 = vshll.u32 %v672, 16
        %v674 = vadd.s32 %v673, %v671
        %vm675 = vcmp.eq.s32.totalorder %v660, %v674
        %v676 = vsel %vm675, 2147483649, %v660
        %v677 = vand.u32 %v676, 65535
        %v678 = vshra.s32 %v676, 16
        %v679 = vcvt.s32.f32 %v677
        %v680 = vcvt.s32.f32 %v678
        %681 = vmax.xlane.f32.xlu0 %v680
        %v682 = vpop.xlane.xlu0 %681
        %vm683 = vcmp.eq.f32.partialorder %v680, %v682
        %v684 = vsel %vm683, %v679, -inf
        %685 = vmax.xlane.f32.xlu0 %v684
        %v686 = vpop.xlane.xlu0 %685
        %v687 = vcvt.f32.s32 %v686
        %v688 = vcvt.f32.s32 %v682
        %v689 = vshll.u32 %v688, 16
        %v690 = vadd.s32 %v689, %v687
        %vm691 = vcmp.eq.s32.totalorder %v676, %v690
        %v692 = vsel %vm691, 2147483649, %v676
        %vm693 = vcmp.eq.s32.totalorder %v692, 2147483649
        %v694 = vsel %vm693, %v428, 0.0
        %v695 = vld [vmem:[#allocation8] sm:$0xf]
        %v696 = vld [vmem:[#allocation8 + $0x4] sm:$0xf]
        %v697 = vpack.c.bf16 %v694, %v694
        %v700 = vunpack.c.l.b16 %v695
        %v701 = vunpack.c.l.b16 %v696
        %v702 = vpack.c.b16 %v701, %v700
        %704 = vmatpush.bf16.xpose.msra.mxu0 0
        %705 = vmatpush.bf16.xpose.msra.mxu0 0
        %706 = vmatpush.bf16.xpose.msra.mxu0 0
        %707 = vmatpush.bf16.xpose.msra.mxu0 0
        %708 = vmatpush.bf16.xpose.msra.mxu0 0
        %709 = vmatpush.bf16.xpose.msra.mxu0 0
        %710 = vmatpush.bf16.xpose.msra.mxu0 0
        %711 = vmatpush.bf16.xpose.msra.mxu0 %v702
        %712 = vmatmul.bf16.gmra.mxu0 %v697
        %v713 = vpop.f32.mrf.mxu0
        %v714 = vadd.f32 0.0, %v713
        %v715 = vpop.f32.mrf.mxu0
        %716 = vdwg.mxu0
        %718 = vrot.lane.b32.xlu0 %v389, 112
        %v719 = vpop.permute.xlu0 %718
        %v721 = vsel %vm390, %v719, 0.0
        %722 = vadd.xlane.f32.xlu0 %v721
        %v723 = vpop.xlane.xlu0 %722
        %v724 = vmax.f32 %v723, 1e-24
        %v725 = vrsqrt.pop %v724
        %v726 = vmul.f32 %v725, %v724
        %v727 = vmul.f32 %v726, %v725
        %v728 = vmul.f32 0.5, %v727
        %v729 = vsub.f32 1.5, %v728
        %v730 = vmul.f32 %v725, %v729
        %vm731 = vweird.f32 %v724
        %vm732 = vweird.f32 %v725
        %vm733 = vmor %vm731, %vm732
        %v734 = vsel %vm733, %v725, %v730
        %v735 = vmul.f32 %v388, %v734
        %v736 = vpack.c.bf16 %v735, %v735
        %s737 = scalar_lea.vmem [#allocation7], 8
        %v738 = vld [vmem:[%s737] sm:$0xf]
        %v739 = vld [vmem:[%s737 + $0x4] sm:$0xf]
        %741 = vrot.lane.b32.xlu0 %v736, 112
        %v742 = vpop.permute.xlu0 %741
        %v745 = vunpack.c.l.b16 %v738
        %v746 = vunpack.c.l.b16 %v739
        %v747 = vpack.c.b16 %v746, %v745
        %v750 = vsel %vm390, %v742, 0
        %752 = vmatpush.bf16.msra.mxu0 0
        %753 = vmatpush.bf16.msra.mxu0 0
        %754 = vmatpush.bf16.msra.mxu0 0
        %755 = vmatpush.bf16.msra.mxu0 0
        %756 = vmatpush.bf16.msra.mxu0 0
        %757 = vmatpush.bf16.msra.mxu0 0
        %758 = vmatpush.bf16.msra.mxu0 0
        %759 = vmatpush.bf16.msra.mxu0 %v747
        %760 = vmatmul.bf16.gmra.mxu0 %v750
        %v761 = vpop.f32.mrf.mxu0
        %v762 = vadd.f32 0.0, %v761
        %v763 = vpop.f32.mrf.mxu0
        %764 = vdwg.mxu0
        %v765 = vmax.f32 %v762, -1.5
        %v766 = vmin.f32 %v765, 1.5
        %v767 = vmul.f32 %v766, 8388608.0
        %v768 = vcvt.f32.s32.to.zero.pseudo %v767
        %v769 = vmul.u32 %v768, 128
        %v770 = vadd.s32 %v769, %v387
        %v771 = vand.u32 %v770, 65535
        %v772 = vshra.s32 %v770, 16
        %v773 = vcvt.s32.f32 %v771
        %v774 = vcvt.s32.f32 %v772
        %775 = vmax.xlane.f32.xlu0 %v774
        %v776 = vpop.xlane.xlu0 %775
        %vm777 = vcmp.eq.f32.partialorder %v774, %v776
        %v778 = vsel %vm777, %v773, -inf
        %779 = vmax.xlane.f32.xlu0 %v778
        %v780 = vpop.xlane.xlu0 %779
        %v781 = vcvt.f32.s32 %v780
        %v782 = vcvt.f32.s32 %v776
        %v783 = vshll.u32 %v782, 16
        %v784 = vadd.s32 %v783, %v781
        %vm785 = vcmp.eq.s32.totalorder %v770, %v784
        %v786 = vsel %vm785, 2147483649, %v770
        %v787 = vand.u32 %v786, 65535
        %v788 = vshra.s32 %v786, 16
        %v789 = vcvt.s32.f32 %v787
        %v790 = vcvt.s32.f32 %v788
        %791 = vmax.xlane.f32.xlu0 %v790
        %v792 = vpop.xlane.xlu0 %791
        %vm793 = vcmp.eq.f32.partialorder %v790, %v792
        %v794 = vsel %vm793, %v789, -inf
        %795 = vmax.xlane.f32.xlu0 %v794
        %v796 = vpop.xlane.xlu0 %795
        %v797 = vcvt.f32.s32 %v796
        %v798 = vcvt.f32.s32 %v792
        %v799 = vshll.u32 %v798, 16
        %v800 = vadd.s32 %v799, %v797
        %vm801 = vcmp.eq.s32.totalorder %v786, %v800
        %v802 = vsel %vm801, 2147483649, %v786
        %v803 = vand.u32 %v802, 65535
        %v804 = vshra.s32 %v802, 16
        %v805 = vcvt.s32.f32 %v803
        %v806 = vcvt.s32.f32 %v804
        %807 = vmax.xlane.f32.xlu0 %v806
        %v808 = vpop.xlane.xlu0 %807
        %vm809 = vcmp.eq.f32.partialorder %v806, %v808
        %v810 = vsel %vm809, %v805, -inf
        %811 = vmax.xlane.f32.xlu0 %v810
        %v812 = vpop.xlane.xlu0 %811
        %v813 = vcvt.f32.s32 %v812
        %v814 = vcvt.f32.s32 %v808
        %v815 = vshll.u32 %v814, 16
        %v816 = vadd.s32 %v815, %v813
        %vm817 = vcmp.eq.s32.totalorder %v802, %v816
        %v818 = vsel %vm817, 2147483649, %v802
        %v819 = vand.u32 %v818, 65535
        %v820 = vshra.s32 %v818, 16
        %v821 = vcvt.s32.f32 %v819
        %v822 = vcvt.s32.f32 %v820
        %823 = vmax.xlane.f32.xlu0 %v822
        %v824 = vpop.xlane.xlu0 %823
        %vm825 = vcmp.eq.f32.partialorder %v822, %v824
        %v826 = vsel %vm825, %v821, -inf
        %827 = vmax.xlane.f32.xlu0 %v826
        %v828 = vpop.xlane.xlu0 %827
        %v829 = vcvt.f32.s32 %v828
        %v830 = vcvt.f32.s32 %v824
        %v831 = vshll.u32 %v830, 16
        %v832 = vadd.s32 %v831, %v829
        %vm833 = vcmp.eq.s32.totalorder %v818, %v832
        %v834 = vsel %vm833, 2147483649, %v818
        %v835 = vand.u32 %v834, 65535
        %v836 = vshra.s32 %v834, 16
        %v837 = vcvt.s32.f32 %v835
        %v838 = vcvt.s32.f32 %v836
        %839 = vmax.xlane.f32.xlu0 %v838
        %v840 = vpop.xlane.xlu0 %839
        %vm841 = vcmp.eq.f32.partialorder %v838, %v840
        %v842 = vsel %vm841, %v837, -inf
        %843 = vmax.xlane.f32.xlu0 %v842
        %v844 = vpop.xlane.xlu0 %843
        %v845 = vcvt.f32.s32 %v844
        %v846 = vcvt.f32.s32 %v840
        %v847 = vshll.u32 %v846, 16
        %v848 = vadd.s32 %v847, %v845
        %vm849 = vcmp.eq.s32.totalorder %v834, %v848
        %v850 = vsel %vm849, 2147483649, %v834
        %v851 = vand.u32 %v850, 65535
        %v852 = vshra.s32 %v850, 16
        %v853 = vcvt.s32.f32 %v851
        %v854 = vcvt.s32.f32 %v852
        %855 = vmax.xlane.f32.xlu0 %v854
        %v856 = vpop.xlane.xlu0 %855
        %vm857 = vcmp.eq.f32.partialorder %v854, %v856
        %v858 = vsel %vm857, %v853, -inf
        %859 = vmax.xlane.f32.xlu0 %v858
        %v860 = vpop.xlane.xlu0 %859
        %v861 = vcvt.f32.s32 %v860
        %v862 = vcvt.f32.s32 %v856
        %v863 = vshll.u32 %v862, 16
        %v864 = vadd.s32 %v863, %v861
        %vm865 = vcmp.eq.s32.totalorder %v850, %v864
        %v866 = vsel %vm865, 2147483649, %v850
        %v867 = vand.u32 %v866, 65535
        %v868 = vshra.s32 %v866, 16
        %v869 = vcvt.s32.f32 %v867
        %v870 = vcvt.s32.f32 %v868
        %871 = vmax.xlane.f32.xlu0 %v870
        %v872 = vpop.xlane.xlu0 %871
        %vm873 = vcmp.eq.f32.partialorder %v870, %v872
        %v874 = vsel %vm873, %v869, -inf
        %875 = vmax.xlane.f32.xlu0 %v874
        %v876 = vpop.xlane.xlu0 %875
        %v877 = vcvt.f32.s32 %v876
        %v878 = vcvt.f32.s32 %v872
        %v879 = vshll.u32 %v878, 16
        %v880 = vadd.s32 %v879, %v877
        %vm881 = vcmp.eq.s32.totalorder %v866, %v880
        %v882 = vsel %vm881, 2147483649, %v866
        %v883 = vand.u32 %v882, 65535
        %v884 = vshra.s32 %v882, 16
        %v885 = vcvt.s32.f32 %v883
        %v886 = vcvt.s32.f32 %v884
        %887 = vmax.xlane.f32.xlu0 %v886
        %v888 = vpop.xlane.xlu0 %887
        %vm889 = vcmp.eq.f32.partialorder %v886, %v888
        %v890 = vsel %vm889, %v885, -inf
        %891 = vmax.xlane.f32.xlu0 %v890
        %v892 = vpop.xlane.xlu0 %891
        %v893 = vcvt.f32.s32 %v892
        %v894 = vcvt.f32.s32 %v888
        %v895 = vshll.u32 %v894, 16
        %v896 = vadd.s32 %v895, %v893
        %vm897 = vcmp.eq.s32.totalorder %v882, %v896
        %v898 = vsel %vm897, 2147483649, %v882
        %v899 = vand.u32 %v898, 65535
        %v900 = vshra.s32 %v898, 16
        %v901 = vcvt.s32.f32 %v899
        %v902 = vcvt.s32.f32 %v900
        %903 = vmax.xlane.f32.xlu0 %v902
        %v904 = vpop.xlane.xlu0 %903
        %vm905 = vcmp.eq.f32.partialorder %v902, %v904
        %v906 = vsel %vm905, %v901, -inf
        %907 = vmax.xlane.f32.xlu0 %v906
        %v908 = vpop.xlane.xlu0 %907
        %v909 = vcvt.f32.s32 %v908
        %v910 = vcvt.f32.s32 %v904
        %v911 = vshll.u32 %v910, 16
        %v912 = vadd.s32 %v911, %v909
        %vm913 = vcmp.eq.s32.totalorder %v898, %v912
        %v914 = vsel %vm913, 2147483649, %v898
        %v915 = vand.u32 %v914, 65535
        %v916 = vshra.s32 %v914, 16
        %v917 = vcvt.s32.f32 %v915
        %v918 = vcvt.s32.f32 %v916
        %919 = vmax.xlane.f32.xlu0 %v918
        %v920 = vpop.xlane.xlu0 %919
        %vm921 = vcmp.eq.f32.partialorder %v918, %v920
        %v922 = vsel %vm921, %v917, -inf
        %923 = vmax.xlane.f32.xlu0 %v922
        %v924 = vpop.xlane.xlu0 %923
        %v925 = vcvt.f32.s32 %v924
        %v926 = vcvt.f32.s32 %v920
        %v927 = vshll.u32 %v926, 16
        %v928 = vadd.s32 %v927, %v925
        %vm929 = vcmp.eq.s32.totalorder %v914, %v928
        %v930 = vsel %vm929, 2147483649, %v914
        %v931 = vand.u32 %v930, 65535
        %v932 = vshra.s32 %v930, 16
        %v933 = vcvt.s32.f32 %v931
        %v934 = vcvt.s32.f32 %v932
        %935 = vmax.xlane.f32.xlu0 %v934
        %v936 = vpop.xlane.xlu0 %935
        %vm937 = vcmp.eq.f32.partialorder %v934, %v936
        %v938 = vsel %vm937, %v933, -inf
        %939 = vmax.xlane.f32.xlu0 %v938
        %v940 = vpop.xlane.xlu0 %939
        %v941 = vcvt.f32.s32 %v940
        %v942 = vcvt.f32.s32 %v936
        %v943 = vshll.u32 %v942, 16
        %v944 = vadd.s32 %v943, %v941
        %vm945 = vcmp.eq.s32.totalorder %v930, %v944
        %v946 = vsel %vm945, 2147483649, %v930
        %v947 = vand.u32 %v946, 65535
        %v948 = vshra.s32 %v946, 16
        %v949 = vcvt.s32.f32 %v947
        %v950 = vcvt.s32.f32 %v948
        %951 = vmax.xlane.f32.xlu0 %v950
        %v952 = vpop.xlane.xlu0 %951
        %vm953 = vcmp.eq.f32.partialorder %v950, %v952
        %v954 = vsel %vm953, %v949, -inf
        %955 = vmax.xlane.f32.xlu0 %v954
        %v956 = vpop.xlane.xlu0 %955
        %v957 = vcvt.f32.s32 %v956
        %v958 = vcvt.f32.s32 %v952
        %v959 = vshll.u32 %v958, 16
        %v960 = vadd.s32 %v959, %v957
        %vm961 = vcmp.eq.s32.totalorder %v946, %v960
        %v962 = vsel %vm961, 2147483649, %v946
        %v963 = vand.u32 %v962, 65535
        %v964 = vshra.s32 %v962, 16
        %v965 = vcvt.s32.f32 %v963
        %v966 = vcvt.s32.f32 %v964
        %967 = vmax.xlane.f32.xlu0 %v966
        %v968 = vpop.xlane.xlu0 %967
        %vm969 = vcmp.eq.f32.partialorder %v966, %v968
        %v970 = vsel %vm969, %v965, -inf
        %971 = vmax.xlane.f32.xlu0 %v970
        %v972 = vpop.xlane.xlu0 %971
        %v973 = vcvt.f32.s32 %v972
        %v974 = vcvt.f32.s32 %v968
        %v975 = vshll.u32 %v974, 16
        %v976 = vadd.s32 %v975, %v973
        %vm977 = vcmp.eq.s32.totalorder %v962, %v976
        %v978 = vsel %vm977, 2147483649, %v962
        %v979 = vand.u32 %v978, 65535
        %v980 = vshra.s32 %v978, 16
        %v981 = vcvt.s32.f32 %v979
        %v982 = vcvt.s32.f32 %v980
        %983 = vmax.xlane.f32.xlu0 %v982
        %v984 = vpop.xlane.xlu0 %983
        %vm985 = vcmp.eq.f32.partialorder %v982, %v984
        %v986 = vsel %vm985, %v981, -inf
        %987 = vmax.xlane.f32.xlu0 %v986
        %v988 = vpop.xlane.xlu0 %987
        %v989 = vcvt.f32.s32 %v988
        %v990 = vcvt.f32.s32 %v984
        %v991 = vshll.u32 %v990, 16
        %v992 = vadd.s32 %v991, %v989
        %vm993 = vcmp.eq.s32.totalorder %v978, %v992
        %v994 = vsel %vm993, 2147483649, %v978
        %v995 = vand.u32 %v994, 65535
        %v996 = vshra.s32 %v994, 16
        %v997 = vcvt.s32.f32 %v995
        %v998 = vcvt.s32.f32 %v996
        %999 = vmax.xlane.f32.xlu0 %v998
        %v1000 = vpop.xlane.xlu0 %999
        %vm1001 = vcmp.eq.f32.partialorder %v998, %v1000
        %v1002 = vsel %vm1001, %v997, -inf
        %1003 = vmax.xlane.f32.xlu0 %v1002
        %v1004 = vpop.xlane.xlu0 %1003
        %v1005 = vcvt.f32.s32 %v1004
        %v1006 = vcvt.f32.s32 %v1000
        %v1007 = vshll.u32 %v1006, 16
        %v1008 = vadd.s32 %v1007, %v1005
        %vm1009 = vcmp.eq.s32.totalorder %v994, %v1008
        %v1010 = vsel %vm1009, 2147483649, %v994
        %v1011 = vand.u32 %v1010, 65535
        %v1012 = vshra.s32 %v1010, 16
        %v1013 = vcvt.s32.f32 %v1011
        %v1014 = vcvt.s32.f32 %v1012
        %1015 = vmax.xlane.f32.xlu0 %v1014
        %v1016 = vpop.xlane.xlu0 %1015
        %vm1017 = vcmp.eq.f32.partialorder %v1014, %v1016
        %v1018 = vsel %vm1017, %v1013, -inf
        %1019 = vmax.xlane.f32.xlu0 %v1018
        %v1020 = vpop.xlane.xlu0 %1019
        %v1021 = vcvt.f32.s32 %v1020
        %v1022 = vcvt.f32.s32 %v1016
        %v1023 = vshll.u32 %v1022, 16
        %v1024 = vadd.s32 %v1023, %v1021
        %vm1025 = vcmp.eq.s32.totalorder %v1010, %v1024
        %v1026 = vsel %vm1025, 2147483649, %v1010
        %vm1027 = vcmp.eq.s32.totalorder %v1026, 2147483649
        %v1028 = vsel %vm1027, %v762, 0.0
        %s1029 = scalar_lea.vmem [#allocation8], 8
        %v1030 = vld [vmem:[%s1029] sm:$0xf]
        %v1031 = vld [vmem:[%s1029 + $0x4] sm:$0xf]
        %v1032 = vpack.c.bf16 %v1028, %v1028
        %v1035 = vunpack.c.l.b16 %v1030
        %v1036 = vunpack.c.l.b16 %v1031
        %v1037 = vpack.c.b16 %v1036, %v1035
        %1039 = vmatpush.bf16.xpose.msra.mxu0 0
        %1040 = vmatpush.bf16.xpose.msra.mxu0 0
        %1041 = vmatpush.bf16.xpose.msra.mxu0 0
        %1042 = vmatpush.bf16.xpose.msra.mxu0 0
        %1043 = vmatpush.bf16.xpose.msra.mxu0 0
        %1044 = vmatpush.bf16.xpose.msra.mxu0 0
        %1045 = vmatpush.bf16.xpose.msra.mxu0 0
        %1046 = vmatpush.bf16.xpose.msra.mxu0 %v1037
        %1047 = vmatmul.bf16.gmra.mxu0 %v1032
        %v1048 = vpop.f32.mrf.mxu0
        %v1049 = vadd.f32 0.0, %v1048
        %v1050 = vpop.f32.mrf.mxu0
        %1051 = vdwg.mxu0
        %1053 = vrot.lane.b32.xlu0 %v1049, 16
        %v1054 = vpop.permute.xlu0 %1053
        %v1056 = vsel %vm390, %v714, %v1054
        %v1057 = vld [vmem:[%s350] sm:$0xf]
        %v1058 = vunpack.c.l.bf16 %v1057
        %v1059 = vld [vmem:[#allocation2] sm:$0x1]
        %v1061 = vperm.slane %v1059, 0
        %v1063 = vmul.f32 %v1061, %v1056
        %v1064 = vsub.f32 1.0, %v1059
        %v1066 = vperm.slane %v1064, 0
        %v1068 = vmul.f32 %v1066, %v1058
        %v1069 = vadd.f32 %v1063, %v1068
        %v1070 = vpack.c.bf16 %v1069, %v1069
        %vm1071 = vcmask 257024
        %1072 = vst.msk [vmem:[%s382] sm:$0xf] %vm1071, %v1070
        %s1073 = sand.u32 %s193, 1
        %s1074 = scalar_lea.sflag [#allocation4], %s1073
        %s1075 = sand.u32 %s193, 1
        %s1076 = smul.addr %s1075, 4
        %s1077 = scalar_lea.vmem [#allocation11], %s1076
        // Predicated region
        $region61: #{tpu_custom_call.1} parent=39 // pred_check
          %p1078 = pneg %p203
        $region62: #{tpu_custom_call.1} parent=39 // pred_check_branch
          %1080 = sbr.rel (%p1078) target = $region64
        $region63: #{tpu_custom_call.1} parent=39 // pred_region
          %1082 = vsyncadd %s1074, 0
          %s1083 = sadd.s32 %s31, %s29
          %s1084 = sadd.s32 %s1083, %s30
          %s1085 = smul.addr %s1084, 4
          %s1086 = scalar_lea.hbm %s5, %s1085
          %s1088 = sshll.u32 %s1077, 4
          %s1089 = int_to_ptr.vmem [resolvable:$true] %s1088
          %s1090 = sshll.u32 %s1086, 4
          %s1091 = int_to_ptr.hbm [resolvable:$true] %s1090
          %1093 = dma.vmem_to_hbm [thread:$0]  %s1089, 64, %s1091, %s1074
        $region64: #{tpu_custom_call.1} parent=39 // pred_fallthru
          _
      $region40: #{tpu_custom_call.1} parent=5 // pred_fallthru
        _
      %p1094 = scmp.le.s32.totalorder 2, %s19
      // Predicated region
      $region65: #{tpu_custom_call.1} parent=5 // pred_check
        %p1095 = pneg %p1094
      $region66: #{tpu_custom_call.1} parent=5 // pred_check_branch
        %1097 = sbr.rel (%p1095) target = $region68
      $region67: #{tpu_custom_call.1} parent=5 // pred_region
        %s1098 = ssub.s32 %s19, 2
        // Predicated region
        $region69: #{tpu_custom_call.1} parent=67 // pred_check
          %p1099 = pneg %p209
        $region70: #{tpu_custom_call.1} parent=67 // pred_check_branch
          %1101 = sbr.rel (%p1099) target = $region72
        $region71: #{tpu_custom_call.1} parent=67 // pred_region
          %s1102 = sand.u32 %s194, 1
          %s1103 = scalar_lea.sflag [#allocation4], %s1102
          %s1104 = sand.u32 %s194, 1
          %s1105 = smul.addr %s1104, 4
          %s1106 = scalar_lea.vmem [#allocation11], %s1105
          %1108 = dma.done %s1103, 64
        $region72: #{tpu_custom_call.1} parent=67 // pred_fallthru
          _
      $region68: #{tpu_custom_call.1} parent=5 // pred_fallthru
        _
    $region6: #{tpu_custom_call.1} parent=1 // loop_footer
      %s23 = sadd.s32 1, %s19
    $region7: #{tpu_custom_call.1} parent=1 // loop_footer_branch
      %18 = sbr.rel target = $region3
    $region8: #{tpu_custom_call.1} parent=1 // loop_exit
      _
    %1109 = vsyncpa [#allocation3], 1
    %s1110 = scalar_lea.sflag [#allocation3], 1
    %1111 = vsyncpa %s1110, 1
    %1112 = vsyncpa [#allocation6], 1
    %s1113 = scalar_lea.sflag [#allocation6], 1
    %1114 = vsyncpa %s1113, 1
    %1115 = vsyncpa [#allocation9], 1
    %1116 = vsyncpa [#allocation4], 1
    %s1117 = scalar_lea.sflag [#allocation4], 1
    %1118 = vsyncpa %s1117, 1

</llo_original>
